<compile_context>
chip_gen: v6e
topology: v6e:2x2x1
jax: 0.10.0
libtpu: 0.0.40
codegen_flags: <defaults>
</compile_context>

<pallas_src>
import jax
import jax.numpy as jnp
from jax.experimental import pallas as pl
from jax.experimental.pallas import tpu as pltpu


def bmm_pair_kernel(a_ref, b_ref, o_ref):
    # a_ref: (HP, M, K), b_ref: (HP, K, N), o_ref: (HP, M, N)
    o_ref[...] = jnp.einsum(
        "hmk,hkn->hmn",
        a_ref[...],
        b_ref[...],
        preferred_element_type=jnp.float32,
    ).astype(o_ref.dtype)


def batched_matmul(a, b):
    # a: (BH, M, K), b: (BH, K, N) -> (BH, M, N)
    BH, M, K = a.shape
    _, _, N = b.shape

    # Two heads per grid step when possible (keeps the axis extent >= 2 so
    # v7x's two TensorCores each take one step); fall back to 1 otherwise.
    HP = 2 if BH % 2 == 0 else 1
    steps = BH // HP

    itemsize = a.dtype.itemsize
    cost = pl.CostEstimate(
        flops=2 * BH * M * K * N,
        transcendentals=0,
        bytes_accessed=itemsize * (BH * M * K + BH * K * N + BH * M * N),
    )

    return pl.pallas_call(
        bmm_pair_kernel,
        out_shape=jax.ShapeDtypeStruct((BH, M, N), a.dtype),
        grid_spec=pltpu.PrefetchScalarGridSpec(
            num_scalar_prefetch=0,
            grid=(steps,),
            in_specs=[
                pl.BlockSpec((HP, M, K), lambda p: (p, 0, 0)),
                pl.BlockSpec((HP, K, N), lambda p: (p, 0, 0)),
            ],
            out_specs=pl.BlockSpec((HP, M, N), lambda p: (p, 0, 0)),
        ),
        compiler_params=pltpu.CompilerParams(
            dimension_semantics=("parallel",)
        ),
        cost_estimate=cost,
    )(a, b)


def forward(x306, x294):
    # x306: (B, H, M, K), x294: (B, H, K, N) -> (B, H, M, N)
    B, H, M, K = x306.shape
    _, _, _, N = x294.shape
    a = x306.reshape(B * H, M, K)
    b = x294.reshape(B * H, K, N)
    out = batched_matmul(a, b)
    return out.reshape(B, H, M, N)


if __name__ == "__main__":
    key = jax.random.PRNGKey(0)
    k1, k2 = jax.random.split(key)
    x294 = jax.random.normal(k1, (1, 4, 384, 64), dtype=jnp.float32)
    x306 = jax.random.normal(k2, (1, 4, 384, 384), dtype=jnp.float32)

    x307 = forward(x306, x294)
    jax.block_until_ready(x307)

    # correctness check against plain JAX
    ref = jnp.matmul(x306, x294)
    assert x307.shape == (1, 4, 384, 64)
    assert jnp.allclose(x307, ref, atol=1e-4, rtol=1e-4)

    print("KERNEL_OK")
</pallas_src>

<mosaic_0001>
module attributes {stable_mosaic.version = 11 : i64} {
  func.func @bmm_pair_kernel(%arg0: i32, %arg1: memref<2x384x384xf32, #tpu.memory_space<vmem>>, %arg2: memref<2x384x64xf32, #tpu.memory_space<vmem>>, %arg3: memref<2x384x64xf32, #tpu.memory_space<vmem>>) attributes {dimension_semantics = [#tpu.dimension_semantics<parallel>], iteration_bounds = array<i64: 2>, scalar_prefetch = 0 : i64, scratch_operands = 0 : i64, tpu.core_type = #tpu.core_type<tc>, window_params = [{transform_indices = @transform_0, window_bounds = array<i64: 2, 384, 384>}, {transform_indices = @transform_1, window_bounds = array<i64: 2, 384, 64>}, {transform_indices = @transform_2, window_bounds = array<i64: 2, 384, 64>}]} {
    %c0 = arith.constant 0 : index
    %c0_0 = arith.constant 0 : index
    %c0_1 = arith.constant 0 : index
    %0 = vector.load %arg1[%c0, %c0_0, %c0_1] : memref<2x384x384xf32, #tpu.memory_space<vmem>>, vector<2x384x384xf32>
    %c0_2 = arith.constant 0 : index
    %c0_3 = arith.constant 0 : index
    %c0_4 = arith.constant 0 : index
    %1 = vector.load %arg2[%c0_2, %c0_3, %c0_4] : memref<2x384x64xf32, #tpu.memory_space<vmem>>, vector<2x384x64xf32>
    "tpu.trace_start"() <{level = 10 : i32, message = "hmk,hkn->hmn"}> : () -> ()
    %cst = arith.constant dense<0.000000e+00> : vector<2x384x64xf32>
    %2 = tpu.matmul %0, %1, %cst {dimension_numbers = #tpu.dot_dimension_numbers<[2], [1], [1], [2], [0, 0, 0, 1, 1, 2], [0], [0]>} : vector<2x384x384xf32>, vector<2x384x64xf32>, vector<2x384x64xf32> -> vector<2x384x64xf32>
    "tpu.trace_stop"() : () -> ()
    %c0_5 = arith.constant 0 : index
    %c0_6 = arith.constant 0 : index
    %c0_7 = arith.constant 0 : index
    %3 = vector.load %arg3[%c0_5, %c0_6, %c0_7] : memref<2x384x64xf32, #tpu.memory_space<vmem>>, vector<2x384x64xf32>
    tpu.vector_store %arg3[%c0_5, %c0_6, %c0_7], %2 {strides = array<i32>} : memref<2x384x64xf32, #tpu.memory_space<vmem>>, vector<2x384x64xf32>,
    return
  }
  func.func @transform_0(%arg0: i32) -> (i32, i32, i32) {
    %c0_i32 = arith.constant 0 : i32
    %c0_i32_0 = arith.constant 0 : i32
    %c0_i32_1 = arith.constant 0 : i32
    return %arg0, %c0_i32, %c0_i32_0 : i32, i32, i32
  }
  func.func @transform_1(%arg0: i32) -> (i32, i32, i32) {
    %c0_i32 = arith.constant 0 : i32
    %c0_i32_0 = arith.constant 0 : i32
    %c0_i32_1 = arith.constant 0 : i32
    return %arg0, %c0_i32, %c0_i32_0 : i32, i32, i32
  }
  func.func @transform_2(%arg0: i32) -> (i32, i32, i32) {
    %c0_i32 = arith.constant 0 : i32
    %c0_i32_0 = arith.constant 0 : i32
    %c0_i32_1 = arith.constant 0 : i32
    return %arg0, %c0_i32, %c0_i32_0 : i32, i32, i32
  }
}

</mosaic_0001>

<llo_original>
// kernel: tpu_custom_call.1
$region0: #{tpu_custom_call.1}
  #allocation0 [shape = 'u32[]', space=smem, size = 0x4, offset = 0x4, fixed_abs, tag = 'smem constant byte address 0x4 - core index']
  #allocation1 [shape = 'u32[144,128]{1,0:T(1,128)}', space=vmem, size = 0x12000, scoped, tag = 'internal scratch']
  %s0 = inlined_call_operand.hbm [shape: f32[4,384,384], index: 0, kind: input, shape index: {}]
  %s1 = inlined_call_operand.vmem [shape: f32[4,384,64], index: 1, kind: input, shape index: {}]
  %s2 = inlined_call_operand.vmem [shape: f32[4,384,64], index: 2, kind: output, shape index: {}]
  %s3 = sld [smem:[#allocation0]]
  $region45: #{tpu_custom_call.1} parent=0
    _
  %s5 = ssub.s32 1, %s3
  %s6 = scalar_select 0, %s5, %s3
  $region1: #{tpu_custom_call.1} parent=0
    #allocation2 [shape = 'u8[2359296]{0}', space=vmem, size = 0x240000, scoped, tag = 'input window, operand 0']
    #allocation3 [shape = 's32[2]{0}', space=sflag, size = 0x8, scoped, tag = 'scoped memory for tpu_custom_call.1']
    %7 = vsyncpa [#allocation3], 0
    %s8 = scalar_lea.sflag [#allocation3], 1
    %9 = vsyncpa %s8, 0
    loop: start=0, step=1, limit=4
    $region2: #{tpu_custom_call.1} parent=1 // loop_pre_header
      _
    $region3: #{tpu_custom_call.1} parent=1 // loop_header
      %s11 = sphi 0, %s15
      %p12 = scmp.ge.s32.totalorder %s11, 4
      %s21 = sphi 0, %s23
      %s24 = sphi 0, %s21
      %s25 = sphi 0, %s24
      %s41 = sphi 0, %s25
      %s47 = sphi 0, %s49
      %s50 = sphi 0, %s47
      %s51 = sphi 0, %s50
      %s67 = sphi 0, %s51
      %s73 = sphi 0, %s75
      %s76 = sphi 0, %s73
      %s77 = sphi 0, %s76
      %s93 = sphi 0, %s77
    $region4: #{tpu_custom_call.1} parent=1 // loop_header_branch
      %14 = sbr.rel (%p12) target = $region8
    $region5: #{tpu_custom_call.1} parent=1 // loop_body
      %s16 = ssub.s32 %s11, 1
      %s17 = ssub.s32 %s11, 2
      %s18 = sadd.s32 %s11, 1
      %s19 = ssub.s32 %s11, %s18
      %p20 = scmp.eq.s32.totalorder %s19, 0
      %s22 = sadd.s32 %s21, 1
      %s23 = scalar_select %p20, %s21, %s22
      %p26 = pneg %p20
      %p27 = scmp.eq.s32.totalorder %s11, 1
      %p28 = por %p26, %p27
      %p29 = scmp.ne.s32.totalorder %s21, %s24
      %p30 = scmp.eq.s32.totalorder %s11, 0
      %p31 = por %p29, %p30
      %p32 = scmp.ne.s32.totalorder %s21, %s24
      %p33 = scmp.eq.s32.totalorder %s16, 1
      %p34 = por %p32, %p33
      %p35 = scmp.ne.s32.totalorder %s24, %s25
      %p36 = scmp.eq.s32.totalorder %s16, 0
      %p37 = por %p35, %p36
      %p38 = scmp.ne.s32.totalorder %s24, %s25
      %p39 = scmp.eq.s32.totalorder %s17, 1
      %p40 = por %p38, %p39
      %p42 = scmp.ne.s32.totalorder %s25, %s41
      %p43 = scmp.eq.s32.totalorder %s17, 0
      %p44 = por %p42, %p43
      %s45 = ssub.s32 %s11, %s18
      %p46 = scmp.eq.s32.totalorder %s45, 0
      %s48 = sadd.s32 %s47, 1
      %s49 = scalar_select %p46, %s47, %s48
      %p52 = pneg %p46
      %p53 = scmp.eq.s32.totalorder %s11, 1
      %p54 = por %p52, %p53
      %p55 = scmp.ne.s32.totalorder %s47, %s50
      %p56 = scmp.eq.s32.totalorder %s11, 0
      %p57 = por %p55, %p56
      %p58 = scmp.ne.s32.totalorder %s47, %s50
      %p59 = scmp.eq.s32.totalorder %s16, 1
      %p60 = por %p58, %p59
      %p61 = scmp.ne.s32.totalorder %s50, %s51
      %p62 = scmp.eq.s32.totalorder %s16, 0
      %p63 = por %p61, %p62
      %p64 = scmp.ne.s32.totalorder %s50, %s51
      %p65 = scmp.eq.s32.totalorder %s17, 1
      %p66 = por %p64, %p65
      %p68 = scmp.ne.s32.totalorder %s51, %s67
      %p69 = scmp.eq.s32.totalorder %s17, 0
      %p70 = por %p68, %p69
      %s71 = ssub.s32 %s11, %s18
      %p72 = scmp.eq.s32.totalorder %s71, 0
      %s74 = sadd.s32 %s73, 1
      %s75 = scalar_select %p72, %s73, %s74
      %p78 = pneg %p72
      %p79 = scmp.eq.s32.totalorder %s11, 1
      %p80 = por %p78, %p79
      %p81 = scmp.ne.s32.totalorder %s73, %s76
      %p82 = scmp.eq.s32.totalorder %s11, 0
      %p83 = por %p81, %p82
      %p84 = scmp.ne.s32.totalorder %s73, %s76
      %p85 = scmp.eq.s32.totalorder %s16, 1
      %p86 = por %p84, %p85
      %p87 = scmp.ne.s32.totalorder %s76, %s77
      %p88 = scmp.eq.s32.totalorder %s16, 0
      %p89 = por %p87, %p88
      %p90 = scmp.ne.s32.totalorder %s76, %s77
      %p91 = scmp.eq.s32.totalorder %s17, 1
      %p92 = por %p90, %p91
      %p94 = scmp.ne.s32.totalorder %s77, %s93
      %p95 = scmp.eq.s32.totalorder %s17, 0
      %p96 = por %p94, %p95
      %p97 = scmp.le.s32.totalorder 1, %s11
      %p98 = scmp.lt.s32.totalorder %s11, 3
      %p99 = pnand %p97, %p98
      %p100 = pneg %p99
      // Predicated region
      $region9: #{tpu_custom_call.1} parent=5 // pred_check
        _
      $region10: #{tpu_custom_call.1} parent=5 // pred_check_branch
        %102 = sbr.rel (%p99) target = $region12
      $region11: #{tpu_custom_call.1} parent=5 // pred_region
        %s103 = ssub.s32 %s11, 1
      $region12: #{tpu_custom_call.1} parent=5 // pred_fallthru
        _
      %p104 = scmp.lt.s32.totalorder %s11, 2
      // Predicated region
      $region13: #{tpu_custom_call.1} parent=5 // pred_check
        %p105 = pneg %p104
      $region14: #{tpu_custom_call.1} parent=5 // pred_check_branch
        %107 = sbr.rel (%p105) target = $region16
      $region15: #{tpu_custom_call.1} parent=5 // pred_region
        // Predicated region
        $region17: #{tpu_custom_call.1} parent=15 // pred_check
          %p108 = pneg %p31
        $region18: #{tpu_custom_call.1} parent=15 // pred_check_branch
          %110 = sbr.rel (%p108) target = $region20
        $region19: #{tpu_custom_call.1} parent=15 // pred_region
          %s111 = sand.u32 %s21, 1
          %s112 = scalar_lea.sflag [#allocation3], %s111
          %s113 = sand.u32 %s21, 1
          %s114 = smul.addr %s113, 2304
          %s115 = scalar_lea.vmem [#allocation2], %s114
          %s116 = smul.u32 2, %s11
          %s118 = ssub.s32 36864, 36864
          %119 = vsyncadd %s112, %s118
          %s120 = smul.addr %s116, 144
          %s121 = smul.addr %s120, 128
          %s122 = scalar_lea.hbm %s0, %s121
          %s123 = sshll.u32 %s115, 4
          %s124 = int_to_ptr.vmem [resolvable:$true] %s123
          %129 = dma.hbm_to_vmem [thread:$0]  %s122, 36864, %s124, %s112, 384, 384, 24
        $region20: #{tpu_custom_call.1} parent=15 // pred_fallthru
          _
        // Predicated region
        $region21: #{tpu_custom_call.1} parent=15 // pred_check
          %p130 = pneg %p57
        $region22: #{tpu_custom_call.1} parent=15 // pred_check_branch
          %132 = sbr.rel (%p130) target = $region24
        $region23: #{tpu_custom_call.1} parent=15 // pred_region
          %s133 = smul.u32 2, %s11
          %p134 = scmp.lt.s32.totalorder %s133, 3
          %s135 = scalar_select %p134, %s133, 3
          %s136 = smul.addr %s135, 48
          %s137 = smul.addr %s136, 8
          %s138 = scalar_lea.vmem %s1, %s137
          %s139 = smul.u32 2, %s11
        $region24: #{tpu_custom_call.1} parent=15 // pred_fallthru
          _
      $region16: #{tpu_custom_call.1} parent=5 // pred_fallthru
        _
      %p140 = scmp.le.s32.totalorder 1, %s11
      %p141 = scmp.lt.s32.totalorder %s11, 3
      %p142 = pnand %p140, %p141
      %p143 = pneg %p142
      // Predicated region
      $region25: #{tpu_custom_call.1} parent=5 // pred_check
        _
      $region26: #{tpu_custom_call.1} parent=5 // pred_check_branch
        %145 = sbr.rel (%p142) target = $region28
      $region27: #{tpu_custom_call.1} parent=5 // pred_region
        %s146 = ssub.s32 %s11, 1
        %s147 = sand.u32 %s24, 1
        %s148 = scalar_lea.sflag [#allocation3], %s147
        %s149 = sand.u32 %s24, 1
        %s150 = smul.addr %s149, 2304
        %s151 = scalar_lea.vmem [#allocation2], %s150
        // Predicated region
        $region29: #{tpu_custom_call.1} parent=27 // pred_check
          %p152 = pneg %p37
        $region30: #{tpu_custom_call.1} parent=27 // pred_check_branch
          %154 = sbr.rel (%p152) target = $region32
        $region31: #{tpu_custom_call.1} parent=27 // pred_region
          %155 = dma.done %s148, 36864
        $region32: #{tpu_custom_call.1} parent=27 // pred_fallthru
          _
        %s156 = sand.u32 %s24, 1
        %s157 = scalar_lea.sflag [#allocation3], %s156
        %s158 = sand.u32 %s24, 1
        %s159 = smul.addr %s158, 2304
        %s160 = scalar_lea.vmem [#allocation2], %s159
        %p161 = pneg %p37
        %p162 = pneg %p34
        %s163 = smul.u32 2, %s16
        %p164 = scmp.lt.s32.totalorder %s163, 3
        %s165 = scalar_select %p164, %s163, 3
        %s166 = smul.addr %s165, 48
        %s167 = smul.addr %s166, 8
        %s168 = scalar_lea.vmem %s1, %s167
        %p169 = pneg %p63
        %p170 = pneg %p60
        %p171 = pneg %p89
        %p172 = pneg %p86
        %s173 = smul.u32 2, %s16
        %p174 = scmp.lt.s32.totalorder %s173, 3
        %s175 = scalar_select %p174, %s173, 3
        %s176 = smul.addr %s175, 48
        %s177 = smul.addr %s176, 8
        %s178 = scalar_lea.vmem %s2, %s177
        %s179 = smul.u32 2, %s16
        %s180 = smul.u32 2, %s16
        %p181 = scmp.lt.s32.totalorder %s180, 3
        %s182 = scalar_select %p181, %s180, 3
        %s183 = smul.addr %s182, 48
        %s184 = smul.addr %s183, 8
        %s185 = scalar_lea.vmem %s1, %s184
        %s186 = smul.u32 2, %s16
        %s187 = smul.u32 2, %s16
        %p188 = scmp.lt.s32.totalorder %s187, 3
        %s189 = scalar_select %p188, %s187, 3
        %s190 = smul.addr %s189, 48
        %s191 = smul.addr %s190, 8
        %s192 = scalar_lea.vmem %s2, %s191
        %s193 = smul.u32 2, %s16
        %v194 = vld [vmem:[%s151] sm:$0xff]
        %v195 = vld [vmem:[%s151 + $0x8] sm:$0xff]
        %v196 = vld [vmem:[%s151 + $0x10] sm:$0xff]
        %v197 = vld [vmem:[%s151 + $0x18] sm:$0xff]
        %v198 = vld [vmem:[%s151 + $0x20] sm:$0xff]
        %v199 = vld [vmem:[%s151 + $0x28] sm:$0xff]
        %v200 = vld [vmem:[%s151 + $0x30] sm:$0xff]
        %v201 = vld [vmem:[%s151 + $0x38] sm:$0xff]
        %v202 = vld [vmem:[%s151 + $0x40] sm:$0xff]
        %v203 = vld [vmem:[%s151 + $0x48] sm:$0xff]
        %v204 = vld [vmem:[%s151 + $0x50] sm:$0xff]
        %v205 = vld [vmem:[%s151 + $0x58] sm:$0xff]
        %v206 = vld [vmem:[%s151 + $0x60] sm:$0xff]
        %v207 = vld [vmem:[%s151 + $0x68] sm:$0xff]
        %v208 = vld [vmem:[%s151 + $0x70] sm:$0xff]
        %v209 = vld [vmem:[%s151 + $0x78] sm:$0xff]
        %v210 = vld [vmem:[%s151 + $0x80] sm:$0xff]
        %v211 = vld [vmem:[%s151 + $0x88] sm:$0xff]
        %v212 = vld [vmem:[%s151 + $0x90] sm:$0xff]
        %v213 = vld [vmem:[%s151 + $0x98] sm:$0xff]
        %v214 = vld [vmem:[%s151 + $0xa0] sm:$0xff]
        %v215 = vld [vmem:[%s151 + $0xa8] sm:$0xff]
        %v216 = vld [vmem:[%s151 + $0xb0] sm:$0xff]
        %v217 = vld [vmem:[%s151 + $0xb8] sm:$0xff]
        %v218 = vld [vmem:[%s151 + $0xc0] sm:$0xff]
        %v219 = vld [vmem:[%s151 + $0xc8] sm:$0xff]
        %v220 = vld [vmem:[%s151 + $0xd0] sm:$0xff]
        %v221 = vld [vmem:[%s151 + $0xd8] sm:$0xff]
        %v222 = vld [vmem:[%s151 + $0xe0] sm:$0xff]
        %v223 = vld [vmem:[%s151 + $0xe8] sm:$0xff]
        %v224 = vld [vmem:[%s151 + $0xf0] sm:$0xff]
        %v225 = vld [vmem:[%s151 + $0xf8] sm:$0xff]
        %v226 = vld [vmem:[%s151 + $0x100] sm:$0xff]
        %v227 = vld [vmem:[%s151 + $0x108] sm:$0xff]
        %v228 = vld [vmem:[%s151 + $0x110] sm:$0xff]
        %v229 = vld [vmem:[%s151 + $0x118] sm:$0xff]
        %v230 = vld [vmem:[%s151 + $0x120] sm:$0xff]
        %v231 = vld [vmem:[%s151 + $0x128] sm:$0xff]
        %v232 = vld [vmem:[%s151 + $0x130] sm:$0xff]
        %v233 = vld [vmem:[%s151 + $0x138] sm:$0xff]
        %v234 = vld [vmem:[%s151 + $0x140] sm:$0xff]
        %v235 = vld [vmem:[%s151 + $0x148] sm:$0xff]
        %v236 = vld [vmem:[%s151 + $0x150] sm:$0xff]
        %v237 = vld [vmem:[%s151 + $0x158] sm:$0xff]
        %v238 = vld [vmem:[%s151 + $0x160] sm:$0xff]
        %v239 = vld [vmem:[%s151 + $0x168] sm:$0xff]
        %v240 = vld [vmem:[%s151 + $0x170] sm:$0xff]
        %v241 = vld [vmem:[%s151 + $0x178] sm:$0xff]
        %v242 = vld [vmem:[%s151 + $0x180] sm:$0xff]
        %v243 = vld [vmem:[%s151 + $0x188] sm:$0xff]
        %v244 = vld [vmem:[%s151 + $0x190] sm:$0xff]
        %v245 = vld [vmem:[%s151 + $0x198] sm:$0xff]
        %v246 = vld [vmem:[%s151 + $0x1a0] sm:$0xff]
        %v247 = vld [vmem:[%s151 + $0x1a8] sm:$0xff]
        %v248 = vld [vmem:[%s151 + $0x1b0] sm:$0xff]
        %v249 = vld [vmem:[%s151 + $0x1b8] sm:$0xff]
        %v250 = vld [vmem:[%s151 + $0x1c0] sm:$0xff]
        %v251 = vld [vmem:[%s151 + $0x1c8] sm:$0xff]
        %v252 = vld [vmem:[%s151 + $0x1d0] sm:$0xff]
        %v253 = vld [vmem:[%s151 + $0x1d8] sm:$0xff]
        %v254 = vld [vmem:[%s151 + $0x1e0] sm:$0xff]
        %v255 = vld [vmem:[%s151 + $0x1e8] sm:$0xff]
        %v256 = vld [vmem:[%s151 + $0x1f0] sm:$0xff]
        %v257 = vld [vmem:[%s151 + $0x1f8] sm:$0xff]
        %v258 = vld [vmem:[%s151 + $0x200] sm:$0xff]
        %v259 = vld [vmem:[%s151 + $0x208] sm:$0xff]
        %v260 = vld [vmem:[%s151 + $0x210] sm:$0xff]
        %v261 = vld [vmem:[%s151 + $0x218] sm:$0xff]
        %v262 = vld [vmem:[%s151 + $0x220] sm:$0xff]
        %v263 = vld [vmem:[%s151 + $0x228] sm:$0xff]
        %v264 = vld [vmem:[%s151 + $0x230] sm:$0xff]
        %v265 = vld [vmem:[%s151 + $0x238] sm:$0xff]
        %v266 = vld [vmem:[%s151 + $0x240] sm:$0xff]
        %v267 = vld [vmem:[%s151 + $0x248] sm:$0xff]
        %v268 = vld [vmem:[%s151 + $0x250] sm:$0xff]
        %v269 = vld [vmem:[%s151 + $0x258] sm:$0xff]
        %v270 = vld [vmem:[%s151 + $0x260] sm:$0xff]
        %v271 = vld [vmem:[%s151 + $0x268] sm:$0xff]
        %v272 = vld [vmem:[%s151 + $0x270] sm:$0xff]
        %v273 = vld [vmem:[%s151 + $0x278] sm:$0xff]
        %v274 = vld [vmem:[%s151 + $0x280] sm:$0xff]
        %v275 = vld [vmem:[%s151 + $0x288] sm:$0xff]
        %v276 = vld [vmem:[%s151 + $0x290] sm:$0xff]
        %v277 = vld [vmem:[%s151 + $0x298] sm:$0xff]
        %v278 = vld [vmem:[%s151 + $0x2a0] sm:$0xff]
        %v279 = vld [vmem:[%s151 + $0x2a8] sm:$0xff]
        %v280 = vld [vmem:[%s151 + $0x2b0] sm:$0xff]
        %v281 = vld [vmem:[%s151 + $0x2b8] sm:$0xff]
        %v282 = vld [vmem:[%s151 + $0x2c0] sm:$0xff]
        %v283 = vld [vmem:[%s151 + $0x2c8] sm:$0xff]
        %v284 = vld [vmem:[%s151 + $0x2d0] sm:$0xff]
        %v285 = vld [vmem:[%s151 + $0x2d8] sm:$0xff]
        %v286 = vld [vmem:[%s151 + $0x2e0] sm:$0xff]
        %v287 = vld [vmem:[%s151 + $0x2e8] sm:$0xff]
        %v288 = vld [vmem:[%s151 + $0x2f0] sm:$0xff]
        %v289 = vld [vmem:[%s151 + $0x2f8] sm:$0xff]
        %v290 = vld [vmem:[%s151 + $0x300] sm:$0xff]
        %v291 = vld [vmem:[%s151 + $0x308] sm:$0xff]
        %v292 = vld [vmem:[%s151 + $0x310] sm:$0xff]
        %v293 = vld [vmem:[%s151 + $0x318] sm:$0xff]
        %v294 = vld [vmem:[%s151 + $0x320] sm:$0xff]
        %v295 = vld [vmem:[%s151 + $0x328] sm:$0xff]
        %v296 = vld [vmem:[%s151 + $0x330] sm:$0xff]
        %v297 = vld [vmem:[%s151 + $0x338] sm:$0xff]
        %v298 = vld [vmem:[%s151 + $0x340] sm:$0xff]
        %v299 = vld [vmem:[%s151 + $0x348] sm:$0xff]
        %v300 = vld [vmem:[%s151 + $0x350] sm:$0xff]
        %v301 = vld [vmem:[%s151 + $0x358] sm:$0xff]
        %v302 = vld [vmem:[%s151 + $0x360] sm:$0xff]
        %v303 = vld [vmem:[%s151 + $0x368] sm:$0xff]
        %v304 = vld [vmem:[%s151 + $0x370] sm:$0xff]
        %v305 = vld [vmem:[%s151 + $0x378] sm:$0xff]
        %v306 = vld [vmem:[%s151 + $0x380] sm:$0xff]
        %v307 = vld [vmem:[%s151 + $0x388] sm:$0xff]
        %v308 = vld [vmem:[%s151 + $0x390] sm:$0xff]
        %v309 = vld [vmem:[%s151 + $0x398] sm:$0xff]
        %v310 = vld [vmem:[%s151 + $0x3a0] sm:$0xff]
        %v311 = vld [vmem:[%s151 + $0x3a8] sm:$0xff]
        %v312 = vld [vmem:[%s151 + $0x3b0] sm:$0xff]
        %v313 = vld [vmem:[%s151 + $0x3b8] sm:$0xff]
        %v314 = vld [vmem:[%s151 + $0x3c0] sm:$0xff]
        %v315 = vld [vmem:[%s151 + $0x3c8] sm:$0xff]
        %v316 = vld [vmem:[%s151 + $0x3d0] sm:$0xff]
        %v317 = vld [vmem:[%s151 + $0x3d8] sm:$0xff]
        %v318 = vld [vmem:[%s151 + $0x3e0] sm:$0xff]
        %v319 = vld [vmem:[%s151 + $0x3e8] sm:$0xff]
        %v320 = vld [vmem:[%s151 + $0x3f0] sm:$0xff]
        %v321 = vld [vmem:[%s151 + $0x3f8] sm:$0xff]
        %v322 = vld [vmem:[%s151 + $0x400] sm:$0xff]
        %v323 = vld [vmem:[%s151 + $0x408] sm:$0xff]
        %v324 = vld [vmem:[%s151 + $0x410] sm:$0xff]
        %v325 = vld [vmem:[%s151 + $0x418] sm:$0xff]
        %v326 = vld [vmem:[%s151 + $0x420] sm:$0xff]
        %v327 = vld [vmem:[%s151 + $0x428] sm:$0xff]
        %v328 = vld [vmem:[%s151 + $0x430] sm:$0xff]
        %v329 = vld [vmem:[%s151 + $0x438] sm:$0xff]
        %v330 = vld [vmem:[%s151 + $0x440] sm:$0xff]
        %v331 = vld [vmem:[%s151 + $0x448] sm:$0xff]
        %v332 = vld [vmem:[%s151 + $0x450] sm:$0xff]
        %v333 = vld [vmem:[%s151 + $0x458] sm:$0xff]
        %v334 = vld [vmem:[%s151 + $0x460] sm:$0xff]
        %v335 = vld [vmem:[%s151 + $0x468] sm:$0xff]
        %v336 = vld [vmem:[%s151 + $0x470] sm:$0xff]
        %v337 = vld [vmem:[%s151 + $0x478] sm:$0xff]
        %v338 = vld [vmem:[%s151 + $0x480] sm:$0xff]
        %v339 = vld [vmem:[%s151 + $0x488] sm:$0xff]
        %v340 = vld [vmem:[%s151 + $0x490] sm:$0xff]
        %v341 = vld [vmem:[%s151 + $0x498] sm:$0xff]
        %v342 = vld [vmem:[%s151 + $0x4a0] sm:$0xff]
        %v343 = vld [vmem:[%s151 + $0x4a8] sm:$0xff]
        %v344 = vld [vmem:[%s151 + $0x4b0] sm:$0xff]
        %v345 = vld [vmem:[%s151 + $0x4b8] sm:$0xff]
        %v346 = vld [vmem:[%s151 + $0x4c0] sm:$0xff]
        %v347 = vld [vmem:[%s151 + $0x4c8] sm:$0xff]
        %v348 = vld [vmem:[%s151 + $0x4d0] sm:$0xff]
        %v349 = vld [vmem:[%s151 + $0x4d8] sm:$0xff]
        %v350 = vld [vmem:[%s151 + $0x4e0] sm:$0xff]
        %v351 = vld [vmem:[%s151 + $0x4e8] sm:$0xff]
        %v352 = vld [vmem:[%s151 + $0x4f0] sm:$0xff]
        %v353 = vld [vmem:[%s151 + $0x4f8] sm:$0xff]
        %v354 = vld [vmem:[%s151 + $0x500] sm:$0xff]
        %v355 = vld [vmem:[%s151 + $0x508] sm:$0xff]
        %v356 = vld [vmem:[%s151 + $0x510] sm:$0xff]
        %v357 = vld [vmem:[%s151 + $0x518] sm:$0xff]
        %v358 = vld [vmem:[%s151 + $0x520] sm:$0xff]
        %v359 = vld [vmem:[%s151 + $0x528] sm:$0xff]
        %v360 = vld [vmem:[%s151 + $0x530] sm:$0xff]
        %v361 = vld [vmem:[%s151 + $0x538] sm:$0xff]
        %v362 = vld [vmem:[%s151 + $0x540] sm:$0xff]
        %v363 = vld [vmem:[%s151 + $0x548] sm:$0xff]
        %v364 = vld [vmem:[%s151 + $0x550] sm:$0xff]
        %v365 = vld [vmem:[%s151 + $0x558] sm:$0xff]
        %v366 = vld [vmem:[%s151 + $0x560] sm:$0xff]
        %v367 = vld [vmem:[%s151 + $0x568] sm:$0xff]
        %v368 = vld [vmem:[%s151 + $0x570] sm:$0xff]
        %v369 = vld [vmem:[%s151 + $0x578] sm:$0xff]
        %v370 = vld [vmem:[%s151 + $0x580] sm:$0xff]
        %v371 = vld [vmem:[%s151 + $0x588] sm:$0xff]
        %v372 = vld [vmem:[%s151 + $0x590] sm:$0xff]
        %v373 = vld [vmem:[%s151 + $0x598] sm:$0xff]
        %v374 = vld [vmem:[%s151 + $0x5a0] sm:$0xff]
        %v375 = vld [vmem:[%s151 + $0x5a8] sm:$0xff]
        %v376 = vld [vmem:[%s151 + $0x5b0] sm:$0xff]
        %v377 = vld [vmem:[%s151 + $0x5b8] sm:$0xff]
        %v378 = vld [vmem:[%s151 + $0x5c0] sm:$0xff]
        %v379 = vld [vmem:[%s151 + $0x5c8] sm:$0xff]
        %v380 = vld [vmem:[%s151 + $0x5d0] sm:$0xff]
        %v381 = vld [vmem:[%s151 + $0x5d8] sm:$0xff]
        %v382 = vld [vmem:[%s151 + $0x5e0] sm:$0xff]
        %v383 = vld [vmem:[%s151 + $0x5e8] sm:$0xff]
        %v384 = vld [vmem:[%s151 + $0x5f0] sm:$0xff]
        %v385 = vld [vmem:[%s151 + $0x5f8] sm:$0xff]
        %v386 = vld [vmem:[%s151 + $0x600] sm:$0xff]
        %v387 = vld [vmem:[%s151 + $0x608] sm:$0xff]
        %v388 = vld [vmem:[%s151 + $0x610] sm:$0xff]
        %v389 = vld [vmem:[%s151 + $0x618] sm:$0xff]
        %v390 = vld [vmem:[%s151 + $0x620] sm:$0xff]
        %v391 = vld [vmem:[%s151 + $0x628] sm:$0xff]
        %v392 = vld [vmem:[%s151 + $0x630] sm:$0xff]
        %v393 = vld [vmem:[%s151 + $0x638] sm:$0xff]
        %v394 = vld [vmem:[%s151 + $0x640] sm:$0xff]
        %v395 = vld [vmem:[%s151 + $0x648] sm:$0xff]
        %v396 = vld [vmem:[%s151 + $0x650] sm:$0xff]
        %v397 = vld [vmem:[%s151 + $0x658] sm:$0xff]
        %v398 = vld [vmem:[%s151 + $0x660] sm:$0xff]
        %v399 = vld [vmem:[%s151 + $0x668] sm:$0xff]
        %v400 = vld [vmem:[%s151 + $0x670] sm:$0xff]
        %v401 = vld [vmem:[%s151 + $0x678] sm:$0xff]
        %v402 = vld [vmem:[%s151 + $0x680] sm:$0xff]
        %v403 = vld [vmem:[%s151 + $0x688] sm:$0xff]
        %v404 = vld [vmem:[%s151 + $0x690] sm:$0xff]
        %v405 = vld [vmem:[%s151 + $0x698] sm:$0xff]
        %v406 = vld [vmem:[%s151 + $0x6a0] sm:$0xff]
        %v407 = vld [vmem:[%s151 + $0x6a8] sm:$0xff]
        %v408 = vld [vmem:[%s151 + $0x6b0] sm:$0xff]
        %v409 = vld [vmem:[%s151 + $0x6b8] sm:$0xff]
        %v410 = vld [vmem:[%s151 + $0x6c0] sm:$0xff]
        %v411 = vld [vmem:[%s151 + $0x6c8] sm:$0xff]
        %v412 = vld [vmem:[%s151 + $0x6d0] sm:$0xff]
        %v413 = vld [vmem:[%s151 + $0x6d8] sm:$0xff]
        %v414 = vld [vmem:[%s151 + $0x6e0] sm:$0xff]
        %v415 = vld [vmem:[%s151 + $0x6e8] sm:$0xff]
        %v416 = vld [vmem:[%s151 + $0x6f0] sm:$0xff]
        %v417 = vld [vmem:[%s151 + $0x6f8] sm:$0xff]
        %v418 = vld [vmem:[%s151 + $0x700] sm:$0xff]
        %v419 = vld [vmem:[%s151 + $0x708] sm:$0xff]
        %v420 = vld [vmem:[%s151 + $0x710] sm:$0xff]
        %v421 = vld [vmem:[%s151 + $0x718] sm:$0xff]
        %v422 = vld [vmem:[%s151 + $0x720] sm:$0xff]
        %v423 = vld [vmem:[%s151 + $0x728] sm:$0xff]
        %v424 = vld [vmem:[%s151 + $0x730] sm:$0xff]
        %v425 = vld [vmem:[%s151 + $0x738] sm:$0xff]
        %v426 = vld [vmem:[%s151 + $0x740] sm:$0xff]
        %v427 = vld [vmem:[%s151 + $0x748] sm:$0xff]
        %v428 = vld [vmem:[%s151 + $0x750] sm:$0xff]
        %v429 = vld [vmem:[%s151 + $0x758] sm:$0xff]
        %v430 = vld [vmem:[%s151 + $0x760] sm:$0xff]
        %v431 = vld [vmem:[%s151 + $0x768] sm:$0xff]
        %v432 = vld [vmem:[%s151 + $0x770] sm:$0xff]
        %v433 = vld [vmem:[%s151 + $0x778] sm:$0xff]
        %v434 = vld [vmem:[%s151 + $0x780] sm:$0xff]
        %v435 = vld [vmem:[%s151 + $0x788] sm:$0xff]
        %v436 = vld [vmem:[%s151 + $0x790] sm:$0xff]
        %v437 = vld [vmem:[%s151 + $0x798] sm:$0xff]
        %v438 = vld [vmem:[%s151 + $0x7a0] sm:$0xff]
        %v439 = vld [vmem:[%s151 + $0x7a8] sm:$0xff]
        %v440 = vld [vmem:[%s151 + $0x7b0] sm:$0xff]
        %v441 = vld [vmem:[%s151 + $0x7b8] sm:$0xff]
        %v442 = vld [vmem:[%s151 + $0x7c0] sm:$0xff]
        %v443 = vld [vmem:[%s151 + $0x7c8] sm:$0xff]
        %v444 = vld [vmem:[%s151 + $0x7d0] sm:$0xff]
        %v445 = vld [vmem:[%s151 + $0x7d8] sm:$0xff]
        %v446 = vld [vmem:[%s151 + $0x7e0] sm:$0xff]
        %v447 = vld [vmem:[%s151 + $0x7e8] sm:$0xff]
        %v448 = vld [vmem:[%s151 + $0x7f0] sm:$0xff]
        %v449 = vld [vmem:[%s151 + $0x7f8] sm:$0xff]
        %v450 = vld [vmem:[%s151 + $0x800] sm:$0xff]
        %v451 = vld [vmem:[%s151 + $0x808] sm:$0xff]
        %v452 = vld [vmem:[%s151 + $0x810] sm:$0xff]
        %v453 = vld [vmem:[%s151 + $0x818] sm:$0xff]
        %v454 = vld [vmem:[%s151 + $0x820] sm:$0xff]
        %v455 = vld [vmem:[%s151 + $0x828] sm:$0xff]
        %v456 = vld [vmem:[%s151 + $0x830] sm:$0xff]
        %v457 = vld [vmem:[%s151 + $0x838] sm:$0xff]
        %v458 = vld [vmem:[%s151 + $0x840] sm:$0xff]
        %v459 = vld [vmem:[%s151 + $0x848] sm:$0xff]
        %v460 = vld [vmem:[%s151 + $0x850] sm:$0xff]
        %v461 = vld [vmem:[%s151 + $0x858] sm:$0xff]
        %v462 = vld [vmem:[%s151 + $0x860] sm:$0xff]
        %v463 = vld [vmem:[%s151 + $0x868] sm:$0xff]
        %v464 = vld [vmem:[%s151 + $0x870] sm:$0xff]
        %v465 = vld [vmem:[%s151 + $0x878] sm:$0xff]
        %v466 = vld [vmem:[%s151 + $0x880] sm:$0xff]
        %v467 = vld [vmem:[%s151 + $0x888] sm:$0xff]
        %v468 = vld [vmem:[%s151 + $0x890] sm:$0xff]
        %v469 = vld [vmem:[%s151 + $0x898] sm:$0xff]
        %v470 = vld [vmem:[%s151 + $0x8a0] sm:$0xff]
        %v471 = vld [vmem:[%s151 + $0x8a8] sm:$0xff]
        %v472 = vld [vmem:[%s151 + $0x8b0] sm:$0xff]
        %v473 = vld [vmem:[%s151 + $0x8b8] sm:$0xff]
        %v474 = vld [vmem:[%s151 + $0x8c0] sm:$0xff]
        %v475 = vld [vmem:[%s151 + $0x8c8] sm:$0xff]
        %v476 = vld [vmem:[%s151 + $0x8d0] sm:$0xff]
        %v477 = vld [vmem:[%s151 + $0x8d8] sm:$0xff]
        %v478 = vld [vmem:[%s151 + $0x8e0] sm:$0xff]
        %v479 = vld [vmem:[%s151 + $0x8e8] sm:$0xff]
        %v480 = vld [vmem:[%s151 + $0x8f0] sm:$0xff]
        %v481 = vld [vmem:[%s151 + $0x8f8] sm:$0xff]
        %v482 = vld [vmem:[%s185] sm:$0xff]
        %v483 = vld [vmem:[%s185 + $0x8] sm:$0xff]
        %v484 = vld [vmem:[%s185 + $0x10] sm:$0xff]
        %v485 = vld [vmem:[%s185 + $0x18] sm:$0xff]
        %v486 = vld [vmem:[%s185 + $0x20] sm:$0xff]
        %v487 = vld [vmem:[%s185 + $0x28] sm:$0xff]
        %v488 = vld [vmem:[%s185 + $0x30] sm:$0xff]
        %v489 = vld [vmem:[%s185 + $0x38] sm:$0xff]
        %v490 = vld [vmem:[%s185 + $0x40] sm:$0xff]
        %v491 = vld [vmem:[%s185 + $0x48] sm:$0xff]
        %v492 = vld [vmem:[%s185 + $0x50] sm:$0xff]
        %v493 = vld [vmem:[%s185 + $0x58] sm:$0xff]
        %v494 = vld [vmem:[%s185 + $0x60] sm:$0xff]
        %v495 = vld [vmem:[%s185 + $0x68] sm:$0xff]
        %v496 = vld [vmem:[%s185 + $0x70] sm:$0xff]
        %v497 = vld [vmem:[%s185 + $0x78] sm:$0xff]
        %v498 = vld [vmem:[%s185 + $0x80] sm:$0xff]
        %v499 = vld [vmem:[%s185 + $0x88] sm:$0xff]
        %v500 = vld [vmem:[%s185 + $0x90] sm:$0xff]
        %v501 = vld [vmem:[%s185 + $0x98] sm:$0xff]
        %v502 = vld [vmem:[%s185 + $0xa0] sm:$0xff]
        %v503 = vld [vmem:[%s185 + $0xa8] sm:$0xff]
        %v504 = vld [vmem:[%s185 + $0xb0] sm:$0xff]
        %v505 = vld [vmem:[%s185 + $0xb8] sm:$0xff]
        %v506 = vld [vmem:[%s185 + $0xc0] sm:$0xff]
        %v507 = vld [vmem:[%s185 + $0xc8] sm:$0xff]
        %v508 = vld [vmem:[%s185 + $0xd0] sm:$0xff]
        %v509 = vld [vmem:[%s185 + $0xd8] sm:$0xff]
        %v510 = vld [vmem:[%s185 + $0xe0] sm:$0xff]
        %v511 = vld [vmem:[%s185 + $0xe8] sm:$0xff]
        %v512 = vld [vmem:[%s185 + $0xf0] sm:$0xff]
        %v513 = vld [vmem:[%s185 + $0xf8] sm:$0xff]
        %v514 = vld [vmem:[%s185 + $0x100] sm:$0xff]
        %v515 = vld [vmem:[%s185 + $0x108] sm:$0xff]
        %v516 = vld [vmem:[%s185 + $0x110] sm:$0xff]
        %v517 = vld [vmem:[%s185 + $0x118] sm:$0xff]
        %v518 = vld [vmem:[%s185 + $0x120] sm:$0xff]
        %v519 = vld [vmem:[%s185 + $0x128] sm:$0xff]
        %v520 = vld [vmem:[%s185 + $0x130] sm:$0xff]
        %v521 = vld [vmem:[%s185 + $0x138] sm:$0xff]
        %v522 = vld [vmem:[%s185 + $0x140] sm:$0xff]
        %v523 = vld [vmem:[%s185 + $0x148] sm:$0xff]
        %v524 = vld [vmem:[%s185 + $0x150] sm:$0xff]
        %v525 = vld [vmem:[%s185 + $0x158] sm:$0xff]
        %v526 = vld [vmem:[%s185 + $0x160] sm:$0xff]
        %v527 = vld [vmem:[%s185 + $0x168] sm:$0xff]
        %v528 = vld [vmem:[%s185 + $0x170] sm:$0xff]
        %v529 = vld [vmem:[%s185 + $0x178] sm:$0xff]
        %v530 = vld [vmem:[%s185 + $0x180] sm:$0xff]
        %v531 = vld [vmem:[%s185 + $0x188] sm:$0xff]
        %v532 = vld [vmem:[%s185 + $0x190] sm:$0xff]
        %v533 = vld [vmem:[%s185 + $0x198] sm:$0xff]
        %v534 = vld [vmem:[%s185 + $0x1a0] sm:$0xff]
        %v535 = vld [vmem:[%s185 + $0x1a8] sm:$0xff]
        %v536 = vld [vmem:[%s185 + $0x1b0] sm:$0xff]
        %v537 = vld [vmem:[%s185 + $0x1b8] sm:$0xff]
        %v538 = vld [vmem:[%s185 + $0x1c0] sm:$0xff]
        %v539 = vld [vmem:[%s185 + $0x1c8] sm:$0xff]
        %v540 = vld [vmem:[%s185 + $0x1d0] sm:$0xff]
        %v541 = vld [vmem:[%s185 + $0x1d8] sm:$0xff]
        %v542 = vld [vmem:[%s185 + $0x1e0] sm:$0xff]
        %v543 = vld [vmem:[%s185 + $0x1e8] sm:$0xff]
        %v544 = vld [vmem:[%s185 + $0x1f0] sm:$0xff]
        %v545 = vld [vmem:[%s185 + $0x1f8] sm:$0xff]
        %v546 = vld [vmem:[%s185 + $0x200] sm:$0xff]
        %v547 = vld [vmem:[%s185 + $0x208] sm:$0xff]
        %v548 = vld [vmem:[%s185 + $0x210] sm:$0xff]
        %v549 = vld [vmem:[%s185 + $0x218] sm:$0xff]
        %v550 = vld [vmem:[%s185 + $0x220] sm:$0xff]
        %v551 = vld [vmem:[%s185 + $0x228] sm:$0xff]
        %v552 = vld [vmem:[%s185 + $0x230] sm:$0xff]
        %v553 = vld [vmem:[%s185 + $0x238] sm:$0xff]
        %v554 = vld [vmem:[%s185 + $0x240] sm:$0xff]
        %v555 = vld [vmem:[%s185 + $0x248] sm:$0xff]
        %v556 = vld [vmem:[%s185 + $0x250] sm:$0xff]
        %v557 = vld [vmem:[%s185 + $0x258] sm:$0xff]
        %v558 = vld [vmem:[%s185 + $0x260] sm:$0xff]
        %v559 = vld [vmem:[%s185 + $0x268] sm:$0xff]
        %v560 = vld [vmem:[%s185 + $0x270] sm:$0xff]
        %v561 = vld [vmem:[%s185 + $0x278] sm:$0xff]
        %v562 = vld [vmem:[%s185 + $0x280] sm:$0xff]
        %v563 = vld [vmem:[%s185 + $0x288] sm:$0xff]
        %v564 = vld [vmem:[%s185 + $0x290] sm:$0xff]
        %v565 = vld [vmem:[%s185 + $0x298] sm:$0xff]
        %v566 = vld [vmem:[%s185 + $0x2a0] sm:$0xff]
        %v567 = vld [vmem:[%s185 + $0x2a8] sm:$0xff]
        %v568 = vld [vmem:[%s185 + $0x2b0] sm:$0xff]
        %v569 = vld [vmem:[%s185 + $0x2b8] sm:$0xff]
        %v570 = vld [vmem:[%s185 + $0x2c0] sm:$0xff]
        %v571 = vld [vmem:[%s185 + $0x2c8] sm:$0xff]
        %v572 = vld [vmem:[%s185 + $0x2d0] sm:$0xff]
        %v573 = vld [vmem:[%s185 + $0x2d8] sm:$0xff]
        %v574 = vld [vmem:[%s185 + $0x2e0] sm:$0xff]
        %v575 = vld [vmem:[%s185 + $0x2e8] sm:$0xff]
        %v576 = vld [vmem:[%s185 + $0x2f0] sm:$0xff]
        %v577 = vld [vmem:[%s185 + $0x2f8] sm:$0xff]
        %578 = vmatprep.subr.mxu0 0.0
        %579 = vmatpush1.msra.mxu0 %v497
        %580 = vmatprep.subr.mxu0 0.0
        %581 = vmatpush1.msra.mxu0 %v496
        %582 = vmatprep.subr.mxu0 0.0
        %583 = vmatpush1.msra.mxu0 %v495
        %584 = vmatprep.subr.mxu0 0.0
        %585 = vmatpush1.msra.mxu0 %v494
        %586 = vmatprep.subr.mxu0 0.0
        %587 = vmatpush1.msra.mxu0 %v493
        %588 = vmatprep.subr.mxu0 0.0
        %589 = vmatpush1.msra.mxu0 %v492
        %590 = vmatprep.subr.mxu0 0.0
        %591 = vmatpush1.msra.mxu0 %v491
        %592 = vmatprep.subr.mxu0 0.0
        %593 = vmatpush1.msra.mxu0 %v490
        %594 = vmatprep.subr.mxu0 0.0
        %595 = vmatpush1.msra.mxu0 %v489
        %596 = vmatprep.subr.mxu0 0.0
        %597 = vmatpush1.msra.mxu0 %v488
        %598 = vmatprep.subr.mxu0 0.0
        %599 = vmatpush1.msra.mxu0 %v487
        %600 = vmatprep.subr.mxu0 0.0
        %601 = vmatpush1.msra.mxu0 %v486
        %602 = vmatprep.subr.mxu0 0.0
        %603 = vmatpush1.msra.mxu0 %v485
        %604 = vmatprep.subr.mxu0 0.0
        %605 = vmatpush1.msra.mxu0 %v484
        %606 = vmatprep.subr.mxu0 0.0
        %607 = vmatpush1.msra.mxu0 %v483
        %608 = vmatprep.subr.mxu0 0.0
        %609 = vmatpush1.msra.mxu0 %v482
        %610 = vmatprep.subr.mxu0 0.0
        %611 = vmatpush2.msra.mxu0 %v513
        %612 = vmatprep.subr.mxu0 0.0
        %613 = vmatpush2.msra.mxu0 %v512
        %614 = vmatprep.subr.mxu0 0.0
        %615 = vmatpush2.msra.mxu0 %v511
        %616 = vmatprep.subr.mxu0 0.0
        %617 = vmatpush2.msra.mxu0 %v510
        %618 = vmatprep.subr.mxu0 0.0
        %619 = vmatpush2.msra.mxu0 %v509
        %620 = vmatprep.subr.mxu0 0.0
        %621 = vmatpush2.msra.mxu0 %v508
        %622 = vmatprep.subr.mxu0 0.0
        %623 = vmatpush2.msra.mxu0 %v507
        %624 = vmatprep.subr.mxu0 0.0
        %625 = vmatpush2.msra.mxu0 %v506
        %626 = vmatprep.subr.mxu0 0.0
        %627 = vmatpush2.msra.mxu0 %v505
        %628 = vmatprep.subr.mxu0 0.0
        %629 = vmatpush2.msra.mxu0 %v504
        %630 = vmatprep.subr.mxu0 0.0
        %631 = vmatpush2.msra.mxu0 %v503
        %632 = vmatprep.subr.mxu0 0.0
        %633 = vmatpush2.msra.mxu0 %v502
        %634 = vmatprep.subr.mxu0 0.0
        %635 = vmatpush2.msra.mxu0 %v501
        %636 = vmatprep.subr.mxu0 0.0
        %637 = vmatpush2.msra.mxu0 %v500
        %638 = vmatprep.subr.mxu0 0.0
        %639 = vmatpush2.msra.mxu0 %v499
        %640 = vmatprep.subr.mxu0 0.0
        %641 = vmatpush2.msra.mxu0 %v498
        %642 = vmatprep.mubr.f32.mxu0 %v195
        %643 = vmatmul.mubr.f32.gmra.mxu0 %v194
        %v644 = vpop.f32.mrf.mxu0
        %v645 = vadd.f32 0.0, %v644
        %v646 = vpop.f32.mrf.mxu0
        %647 = vmatprep.mubr.f32.mxu0 %v198
        %648 = vmatmul.mubr.f32.gmra.mxu0 %v197
        %v649 = vpop.f32.mrf.mxu0
        %v650 = vadd.f32 0.0, %v649
        %v651 = vpop.f32.mrf.mxu0
        %652 = vmatprep.mubr.f32.mxu0 %v201
        %653 = vmatmul.mubr.f32.gmra.mxu0 %v200
        %v654 = vpop.f32.mrf.mxu0
        %v655 = vadd.f32 0.0, %v654
        %v656 = vpop.f32.mrf.mxu0
        %657 = vmatprep.mubr.f32.mxu0 %v204
        %658 = vmatmul.mubr.f32.gmra.mxu0 %v203
        %v659 = vpop.f32.mrf.mxu0
        %v660 = vadd.f32 0.0, %v659
        %v661 = vpop.f32.mrf.mxu0
        %662 = vmatprep.mubr.f32.mxu0 %v207
        %663 = vmatmul.mubr.f32.gmra.mxu0 %v206
        %v664 = vpop.f32.mrf.mxu0
        %v665 = vadd.f32 0.0, %v664
        %v666 = vpop.f32.mrf.mxu0
        %667 = vmatprep.mubr.f32.mxu0 %v210
        %668 = vmatmul.mubr.f32.gmra.mxu0 %v209
        %v669 = vpop.f32.mrf.mxu0
        %v670 = vadd.f32 0.0, %v669
        %v671 = vpop.f32.mrf.mxu0
        %672 = vmatprep.mubr.f32.mxu0 %v213
        %673 = vmatmul.mubr.f32.gmra.mxu0 %v212
        %v674 = vpop.f32.mrf.mxu0
        %v675 = vadd.f32 0.0, %v674
        %v676 = vpop.f32.mrf.mxu0
        %677 = vmatprep.mubr.f32.mxu0 %v216
        %678 = vmatmul.mubr.f32.gmra.mxu0 %v215
        %v679 = vpop.f32.mrf.mxu0
        %v680 = vadd.f32 0.0, %v679
        %v681 = vpop.f32.mrf.mxu0
        %682 = vmatprep.mubr.f32.mxu0 %v219
        %683 = vmatmul.mubr.f32.gmra.mxu0 %v218
        %v684 = vpop.f32.mrf.mxu0
        %v685 = vadd.f32 0.0, %v684
        %v686 = vpop.f32.mrf.mxu0
        %687 = vmatprep.mubr.f32.mxu0 %v222
        %688 = vmatmul.mubr.f32.gmra.mxu0 %v221
        %v689 = vpop.f32.mrf.mxu0
        %v690 = vadd.f32 0.0, %v689
        %v691 = vpop.f32.mrf.mxu0
        %692 = vmatprep.mubr.f32.mxu0 %v225
        %693 = vmatmul.mubr.f32.gmra.mxu0 %v224
        %v694 = vpop.f32.mrf.mxu0
        %v695 = vadd.f32 0.0, %v694
        %v696 = vpop.f32.mrf.mxu0
        %697 = vmatprep.mubr.f32.mxu0 %v228
        %698 = vmatmul.mubr.f32.gmra.mxu0 %v227
        %v699 = vpop.f32.mrf.mxu0
        %v700 = vadd.f32 0.0, %v699
        %v701 = vpop.f32.mrf.mxu0
        %702 = vmatprep.mubr.f32.mxu0 %v231
        %703 = vmatmul.mubr.f32.gmra.mxu0 %v230
        %v704 = vpop.f32.mrf.mxu0
        %v705 = vadd.f32 0.0, %v704
        %v706 = vpop.f32.mrf.mxu0
        %707 = vmatprep.mubr.f32.mxu0 %v234
        %708 = vmatmul.mubr.f32.gmra.mxu0 %v233
        %v709 = vpop.f32.mrf.mxu0
        %v710 = vadd.f32 0.0, %v709
        %v711 = vpop.f32.mrf.mxu0
        %712 = vmatprep.mubr.f32.mxu0 %v237
        %713 = vmatmul.mubr.f32.gmra.mxu0 %v236
        %v714 = vpop.f32.mrf.mxu0
        %v715 = vadd.f32 0.0, %v714
        %v716 = vpop.f32.mrf.mxu0
        %717 = vmatprep.mubr.f32.mxu0 %v240
        %718 = vmatmul.mubr.f32.gmra.mxu0 %v239
        %v719 = vpop.f32.mrf.mxu0
        %v720 = vadd.f32 0.0, %v719
        %v721 = vpop.f32.mrf.mxu0
        %722 = vmatprep.mubr.f32.mxu0 %v243
        %723 = vmatmul.mubr.f32.gmra.mxu0 %v242
        %v724 = vpop.f32.mrf.mxu0
        %v725 = vadd.f32 0.0, %v724
        %v726 = vpop.f32.mrf.mxu0
        %727 = vmatprep.mubr.f32.mxu0 %v246
        %728 = vmatmul.mubr.f32.gmra.mxu0 %v245
        %v729 = vpop.f32.mrf.mxu0
        %v730 = vadd.f32 0.0, %v729
        %v731 = vpop.f32.mrf.mxu0
        %732 = vmatprep.mubr.f32.mxu0 %v249
        %733 = vmatmul.mubr.f32.gmra.mxu0 %v248
        %v734 = vpop.f32.mrf.mxu0
        %v735 = vadd.f32 0.0, %v734
        %v736 = vpop.f32.mrf.mxu0
        %737 = vmatprep.mubr.f32.mxu0 %v252
        %738 = vmatmul.mubr.f32.gmra.mxu0 %v251
        %v739 = vpop.f32.mrf.mxu0
        %v740 = vadd.f32 0.0, %v739
        %v741 = vpop.f32.mrf.mxu0
        %742 = vmatprep.mubr.f32.mxu0 %v255
        %743 = vmatmul.mubr.f32.gmra.mxu0 %v254
        %v744 = vpop.f32.mrf.mxu0
        %v745 = vadd.f32 0.0, %v744
        %v746 = vpop.f32.mrf.mxu0
        %747 = vmatprep.mubr.f32.mxu0 %v258
        %748 = vmatmul.mubr.f32.gmra.mxu0 %v257
        %v749 = vpop.f32.mrf.mxu0
        %v750 = vadd.f32 0.0, %v749
        %v751 = vpop.f32.mrf.mxu0
        %752 = vmatprep.mubr.f32.mxu0 %v261
        %753 = vmatmul.mubr.f32.gmra.mxu0 %v260
        %v754 = vpop.f32.mrf.mxu0
        %v755 = vadd.f32 0.0, %v754
        %v756 = vpop.f32.mrf.mxu0
        %757 = vmatprep.mubr.f32.mxu0 %v264
        %758 = vmatmul.mubr.f32.gmra.mxu0 %v263
        %v759 = vpop.f32.mrf.mxu0
        %v760 = vadd.f32 0.0, %v759
        %v761 = vpop.f32.mrf.mxu0
        %762 = vmatprep.mubr.f32.mxu0 %v267
        %763 = vmatmul.mubr.f32.gmra.mxu0 %v266
        %v764 = vpop.f32.mrf.mxu0
        %v765 = vadd.f32 0.0, %v764
        %v766 = vpop.f32.mrf.mxu0
        %767 = vmatprep.mubr.f32.mxu0 %v270
        %768 = vmatmul.mubr.f32.gmra.mxu0 %v269
        %v769 = vpop.f32.mrf.mxu0
        %v770 = vadd.f32 0.0, %v769
        %v771 = vpop.f32.mrf.mxu0
        %772 = vmatprep.mubr.f32.mxu0 %v273
        %773 = vmatmul.mubr.f32.gmra.mxu0 %v272
        %v774 = vpop.f32.mrf.mxu0
        %v775 = vadd.f32 0.0, %v774
        %v776 = vpop.f32.mrf.mxu0
        %777 = vmatprep.mubr.f32.mxu0 %v276
        %778 = vmatmul.mubr.f32.gmra.mxu0 %v275
        %v779 = vpop.f32.mrf.mxu0
        %v780 = vadd.f32 0.0, %v779
        %v781 = vpop.f32.mrf.mxu0
        %782 = vmatprep.mubr.f32.mxu0 %v279
        %783 = vmatmul.mubr.f32.gmra.mxu0 %v278
        %v784 = vpop.f32.mrf.mxu0
        %v785 = vadd.f32 0.0, %v784
        %v786 = vpop.f32.mrf.mxu0
        %787 = vmatprep.mubr.f32.mxu0 %v282
        %788 = vmatmul.mubr.f32.gmra.mxu0 %v281
        %v789 = vpop.f32.mrf.mxu0
        %v790 = vadd.f32 0.0, %v789
        %v791 = vpop.f32.mrf.mxu0
        %792 = vmatprep.mubr.f32.mxu0 %v285
        %793 = vmatmul.mubr.f32.gmra.mxu0 %v284
        %v794 = vpop.f32.mrf.mxu0
        %v795 = vadd.f32 0.0, %v794
        %v796 = vpop.f32.mrf.mxu0
        %797 = vmatprep.mubr.f32.mxu0 %v288
        %798 = vmatmul.mubr.f32.gmra.mxu0 %v287
        %v799 = vpop.f32.mrf.mxu0
        %v800 = vadd.f32 0.0, %v799
        %v801 = vpop.f32.mrf.mxu0
        %802 = vmatprep.mubr.f32.mxu0 %v291
        %803 = vmatmul.mubr.f32.gmra.mxu0 %v290
        %v804 = vpop.f32.mrf.mxu0
        %v805 = vadd.f32 0.0, %v804
        %v806 = vpop.f32.mrf.mxu0
        %807 = vmatprep.mubr.f32.mxu0 %v294
        %808 = vmatmul.mubr.f32.gmra.mxu0 %v293
        %v809 = vpop.f32.mrf.mxu0
        %v810 = vadd.f32 0.0, %v809
        %v811 = vpop.f32.mrf.mxu0
        %812 = vmatprep.mubr.f32.mxu0 %v297
        %813 = vmatmul.mubr.f32.gmra.mxu0 %v296
        %v814 = vpop.f32.mrf.mxu0
        %v815 = vadd.f32 0.0, %v814
        %v816 = vpop.f32.mrf.mxu0
        %817 = vmatprep.mubr.f32.mxu0 %v300
        %818 = vmatmul.mubr.f32.gmra.mxu0 %v299
        %v819 = vpop.f32.mrf.mxu0
        %v820 = vadd.f32 0.0, %v819
        %v821 = vpop.f32.mrf.mxu0
        %822 = vmatprep.mubr.f32.mxu0 %v303
        %823 = vmatmul.mubr.f32.gmra.mxu0 %v302
        %v824 = vpop.f32.mrf.mxu0
        %v825 = vadd.f32 0.0, %v824
        %v826 = vpop.f32.mrf.mxu0
        %827 = vmatprep.mubr.f32.mxu0 %v306
        %828 = vmatmul.mubr.f32.gmra.mxu0 %v305
        %v829 = vpop.f32.mrf.mxu0
        %v830 = vadd.f32 0.0, %v829
        %v831 = vpop.f32.mrf.mxu0
        %832 = vmatprep.mubr.f32.mxu0 %v309
        %833 = vmatmul.mubr.f32.gmra.mxu0 %v308
        %v834 = vpop.f32.mrf.mxu0
        %v835 = vadd.f32 0.0, %v834
        %v836 = vpop.f32.mrf.mxu0
        %837 = vmatprep.mubr.f32.mxu0 %v312
        %838 = vmatmul.mubr.f32.gmra.mxu0 %v311
        %v839 = vpop.f32.mrf.mxu0
        %v840 = vadd.f32 0.0, %v839
        %v841 = vpop.f32.mrf.mxu0
        %842 = vmatprep.mubr.f32.mxu0 %v315
        %843 = vmatmul.mubr.f32.gmra.mxu0 %v314
        %v844 = vpop.f32.mrf.mxu0
        %v845 = vadd.f32 0.0, %v844
        %v846 = vpop.f32.mrf.mxu0
        %847 = vmatprep.mubr.f32.mxu0 %v318
        %848 = vmatmul.mubr.f32.gmra.mxu0 %v317
        %v849 = vpop.f32.mrf.mxu0
        %v850 = vadd.f32 0.0, %v849
        %v851 = vpop.f32.mrf.mxu0
        %852 = vmatprep.mubr.f32.mxu0 %v321
        %853 = vmatmul.mubr.f32.gmra.mxu0 %v320
        %v854 = vpop.f32.mrf.mxu0
        %v855 = vadd.f32 0.0, %v854
        %v856 = vpop.f32.mrf.mxu0
        %857 = vmatprep.mubr.f32.mxu0 %v324
        %858 = vmatmul.mubr.f32.gmra.mxu0 %v323
        %v859 = vpop.f32.mrf.mxu0
        %v860 = vadd.f32 0.0, %v859
        %v861 = vpop.f32.mrf.mxu0
        %862 = vmatprep.mubr.f32.mxu0 %v327
        %863 = vmatmul.mubr.f32.gmra.mxu0 %v326
        %v864 = vpop.f32.mrf.mxu0
        %v865 = vadd.f32 0.0, %v864
        %v866 = vpop.f32.mrf.mxu0
        %867 = vmatprep.mubr.f32.mxu0 %v330
        %868 = vmatmul.mubr.f32.gmra.mxu0 %v329
        %v869 = vpop.f32.mrf.mxu0
        %v870 = vadd.f32 0.0, %v869
        %v871 = vpop.f32.mrf.mxu0
        %872 = vmatprep.mubr.f32.mxu0 %v333
        %873 = vmatmul.mubr.f32.gmra.mxu0 %v332
        %v874 = vpop.f32.mrf.mxu0
        %v875 = vadd.f32 0.0, %v874
        %v876 = vpop.f32.mrf.mxu0
        %877 = vmatprep.mubr.f32.mxu0 %v336
        %878 = vmatmul.mubr.f32.gmra.mxu0 %v335
        %v879 = vpop.f32.mrf.mxu0
        %v880 = vadd.f32 0.0, %v879
        %v881 = vpop.f32.mrf.mxu0
        %882 = vdwg.mxu0
        %883 = vmatprep.subr.mxu0 0.0
        %884 = vmatpush1.msra.mxu0 %v529
        %885 = vmatprep.subr.mxu0 0.0
        %886 = vmatpush1.msra.mxu0 %v528
        %887 = vmatprep.subr.mxu0 0.0
        %888 = vmatpush1.msra.mxu0 %v527
        %889 = vmatprep.subr.mxu0 0.0
        %890 = vmatpush1.msra.mxu0 %v526
        %891 = vmatprep.subr.mxu0 0.0
        %892 = vmatpush1.msra.mxu0 %v525
        %893 = vmatprep.subr.mxu0 0.0
        %894 = vmatpush1.msra.mxu0 %v524
        %895 = vmatprep.subr.mxu0 0.0
        %896 = vmatpush1.msra.mxu0 %v523
        %897 = vmatprep.subr.mxu0 0.0
        %898 = vmatpush1.msra.mxu0 %v522
        %899 = vmatprep.subr.mxu0 0.0
        %900 = vmatpush1.msra.mxu0 %v521
        %901 = vmatprep.subr.mxu0 0.0
        %902 = vmatpush1.msra.mxu0 %v520
        %903 = vmatprep.subr.mxu0 0.0
        %904 = vmatpush1.msra.mxu0 %v519
        %905 = vmatprep.subr.mxu0 0.0
        %906 = vmatpush1.msra.mxu0 %v518
        %907 = vmatprep.subr.mxu0 0.0
        %908 = vmatpush1.msra.mxu0 %v517
        %909 = vmatprep.subr.mxu0 0.0
        %910 = vmatpush1.msra.mxu0 %v516
        %911 = vmatprep.subr.mxu0 0.0
        %912 = vmatpush1.msra.mxu0 %v515
        %913 = vmatprep.subr.mxu0 0.0
        %914 = vmatpush1.msra.mxu0 %v514
        %915 = vmatprep.subr.mxu0 0.0
        %916 = vmatpush2.msra.mxu0 0.0
        %917 = vmatprep.subr.mxu0 0.0
        %918 = vmatpush2.msra.mxu0 0.0
        %919 = vmatprep.subr.mxu0 0.0
        %920 = vmatpush2.msra.mxu0 0.0
        %921 = vmatprep.subr.mxu0 0.0
        %922 = vmatpush2.msra.mxu0 0.0
        %923 = vmatprep.subr.mxu0 0.0
        %924 = vmatpush2.msra.mxu0 0.0
        %925 = vmatprep.subr.mxu0 0.0
        %926 = vmatpush2.msra.mxu0 0.0
        %927 = vmatprep.subr.mxu0 0.0
        %928 = vmatpush2.msra.mxu0 0.0
        %929 = vmatprep.subr.mxu0 0.0
        %930 = vmatpush2.msra.mxu0 0.0
        %931 = vmatprep.subr.mxu0 0.0
        %932 = vmatpush2.msra.mxu0 0.0
        %933 = vmatprep.subr.mxu0 0.0
        %934 = vmatpush2.msra.mxu0 0.0
        %935 = vmatprep.subr.mxu0 0.0
        %936 = vmatpush2.msra.mxu0 0.0
        %937 = vmatprep.subr.mxu0 0.0
        %938 = vmatpush2.msra.mxu0 0.0
        %939 = vmatprep.subr.mxu0 0.0
        %940 = vmatpush2.msra.mxu0 0.0
        %941 = vmatprep.subr.mxu0 0.0
        %942 = vmatpush2.msra.mxu0 0.0
        %943 = vmatprep.subr.mxu0 0.0
        %944 = vmatpush2.msra.mxu0 0.0
        %945 = vmatprep.subr.mxu0 0.0
        %946 = vmatpush2.msra.mxu0 0.0
        %947 = vmatprep.mubr.f32.mxu0 0.0
        %948 = vmatmul.mubr.f32.gmra.mxu0 %v196
        %v949 = vpop.f32.mrf.mxu0
        %v950 = vadd.f32 %v645, %v949
        %v951 = vpop.f32.mrf.mxu0
        %952 = vmatprep.mubr.f32.mxu0 0.0
        %953 = vmatmul.mubr.f32.gmra.mxu0 %v199
        %v954 = vpop.f32.mrf.mxu0
        %v955 = vadd.f32 %v650, %v954
        %v956 = vpop.f32.mrf.mxu0
        %957 = vmatprep.mubr.f32.mxu0 0.0
        %958 = vmatmul.mubr.f32.gmra.mxu0 %v202
        %v959 = vpop.f32.mrf.mxu0
        %v960 = vadd.f32 %v655, %v959
        %v961 = vpop.f32.mrf.mxu0
        %962 = vmatprep.mubr.f32.mxu0 0.0
        %963 = vmatmul.mubr.f32.gmra.mxu0 %v205
        %v964 = vpop.f32.mrf.mxu0
        %v965 = vadd.f32 %v660, %v964
        %v966 = vpop.f32.mrf.mxu0
        %967 = vmatprep.mubr.f32.mxu0 0.0
        %968 = vmatmul.mubr.f32.gmra.mxu0 %v208
        %v969 = vpop.f32.mrf.mxu0
        %v970 = vadd.f32 %v665, %v969
        %v971 = vpop.f32.mrf.mxu0
        %972 = vmatprep.mubr.f32.mxu0 0.0
        %973 = vmatmul.mubr.f32.gmra.mxu0 %v211
        %v974 = vpop.f32.mrf.mxu0
        %v975 = vadd.f32 %v670, %v974
        %v976 = vpop.f32.mrf.mxu0
        %977 = vmatprep.mubr.f32.mxu0 0.0
        %978 = vmatmul.mubr.f32.gmra.mxu0 %v214
        %v979 = vpop.f32.mrf.mxu0
        %v980 = vadd.f32 %v675, %v979
        %v981 = vpop.f32.mrf.mxu0
        %982 = vmatprep.mubr.f32.mxu0 0.0
        %983 = vmatmul.mubr.f32.gmra.mxu0 %v217
        %v984 = vpop.f32.mrf.mxu0
        %v985 = vadd.f32 %v680, %v984
        %v986 = vpop.f32.mrf.mxu0
        %987 = vmatprep.mubr.f32.mxu0 0.0
        %988 = vmatmul.mubr.f32.gmra.mxu0 %v220
        %v989 = vpop.f32.mrf.mxu0
        %v990 = vadd.f32 %v685, %v989
        %v991 = vpop.f32.mrf.mxu0
        %992 = vmatprep.mubr.f32.mxu0 0.0
        %993 = vmatmul.mubr.f32.gmra.mxu0 %v223
        %v994 = vpop.f32.mrf.mxu0
        %v995 = vadd.f32 %v690, %v994
        %v996 = vpop.f32.mrf.mxu0
        %997 = vmatprep.mubr.f32.mxu0 0.0
        %998 = vmatmul.mubr.f32.gmra.mxu0 %v226
        %v999 = vpop.f32.mrf.mxu0
        %v1000 = vadd.f32 %v695, %v999
        %v1001 = vpop.f32.mrf.mxu0
        %1002 = vmatprep.mubr.f32.mxu0 0.0
        %1003 = vmatmul.mubr.f32.gmra.mxu0 %v229
        %v1004 = vpop.f32.mrf.mxu0
        %v1005 = vadd.f32 %v700, %v1004
        %v1006 = vpop.f32.mrf.mxu0
        %1007 = vmatprep.mubr.f32.mxu0 0.0
        %1008 = vmatmul.mubr.f32.gmra.mxu0 %v232
        %v1009 = vpop.f32.mrf.mxu0
        %v1010 = vadd.f32 %v705, %v1009
        %v1011 = vpop.f32.mrf.mxu0
        %1012 = vmatprep.mubr.f32.mxu0 0.0
        %1013 = vmatmul.mubr.f32.gmra.mxu0 %v235
        %v1014 = vpop.f32.mrf.mxu0
        %v1015 = vadd.f32 %v710, %v1014
        %v1016 = vpop.f32.mrf.mxu0
        %1017 = vmatprep.mubr.f32.mxu0 0.0
        %1018 = vmatmul.mubr.f32.gmra.mxu0 %v238
        %v1019 = vpop.f32.mrf.mxu0
        %v1020 = vadd.f32 %v715, %v1019
        %v1021 = vpop.f32.mrf.mxu0
        %1022 = vmatprep.mubr.f32.mxu0 0.0
        %1023 = vmatmul.mubr.f32.gmra.mxu0 %v241
        %v1024 = vpop.f32.mrf.mxu0
        %v1025 = vadd.f32 %v720, %v1024
        %v1026 = vpop.f32.mrf.mxu0
        %1027 = vmatprep.mubr.f32.mxu0 0.0
        %1028 = vmatmul.mubr.f32.gmra.mxu0 %v244
        %v1029 = vpop.f32.mrf.mxu0
        %v1030 = vadd.f32 %v725, %v1029
        %v1031 = vpop.f32.mrf.mxu0
        %1032 = vmatprep.mubr.f32.mxu0 0.0
        %1033 = vmatmul.mubr.f32.gmra.mxu0 %v247
        %v1034 = vpop.f32.mrf.mxu0
        %v1035 = vadd.f32 %v730, %v1034
        %v1036 = vpop.f32.mrf.mxu0
        %1037 = vmatprep.mubr.f32.mxu0 0.0
        %1038 = vmatmul.mubr.f32.gmra.mxu0 %v250
        %v1039 = vpop.f32.mrf.mxu0
        %v1040 = vadd.f32 %v735, %v1039
        %v1041 = vpop.f32.mrf.mxu0
        %1042 = vmatprep.mubr.f32.mxu0 0.0
        %1043 = vmatmul.mubr.f32.gmra.mxu0 %v253
        %v1044 = vpop.f32.mrf.mxu0
        %v1045 = vadd.f32 %v740, %v1044
        %v1046 = vpop.f32.mrf.mxu0
        %1047 = vmatprep.mubr.f32.mxu0 0.0
        %1048 = vmatmul.mubr.f32.gmra.mxu0 %v256
        %v1049 = vpop.f32.mrf.mxu0
        %v1050 = vadd.f32 %v745, %v1049
        %v1051 = vpop.f32.mrf.mxu0
        %1052 = vmatprep.mubr.f32.mxu0 0.0
        %1053 = vmatmul.mubr.f32.gmra.mxu0 %v259
        %v1054 = vpop.f32.mrf.mxu0
        %v1055 = vadd.f32 %v750, %v1054
        %v1056 = vpop.f32.mrf.mxu0
        %1057 = vmatprep.mubr.f32.mxu0 0.0
        %1058 = vmatmul.mubr.f32.gmra.mxu0 %v262
        %v1059 = vpop.f32.mrf.mxu0
        %v1060 = vadd.f32 %v755, %v1059
        %v1061 = vpop.f32.mrf.mxu0
        %1062 = vmatprep.mubr.f32.mxu0 0.0
        %1063 = vmatmul.mubr.f32.gmra.mxu0 %v265
        %v1064 = vpop.f32.mrf.mxu0
        %v1065 = vadd.f32 %v760, %v1064
        %v1066 = vpop.f32.mrf.mxu0
        %1067 = vmatprep.mubr.f32.mxu0 0.0
        %1068 = vmatmul.mubr.f32.gmra.mxu0 %v268
        %v1069 = vpop.f32.mrf.mxu0
        %v1070 = vadd.f32 %v765, %v1069
        %v1071 = vpop.f32.mrf.mxu0
        %1072 = vmatprep.mubr.f32.mxu0 0.0
        %1073 = vmatmul.mubr.f32.gmra.mxu0 %v271
        %v1074 = vpop.f32.mrf.mxu0
        %v1075 = vadd.f32 %v770, %v1074
        %v1076 = vpop.f32.mrf.mxu0
        %1077 = vmatprep.mubr.f32.mxu0 0.0
        %1078 = vmatmul.mubr.f32.gmra.mxu0 %v274
        %v1079 = vpop.f32.mrf.mxu0
        %v1080 = vadd.f32 %v775, %v1079
        %v1081 = vpop.f32.mrf.mxu0
        %1082 = vmatprep.mubr.f32.mxu0 0.0
        %1083 = vmatmul.mubr.f32.gmra.mxu0 %v277
        %v1084 = vpop.f32.mrf.mxu0
        %v1085 = vadd.f32 %v780, %v1084
        %v1086 = vpop.f32.mrf.mxu0
        %1087 = vmatprep.mubr.f32.mxu0 0.0
        %1088 = vmatmul.mubr.f32.gmra.mxu0 %v280
        %v1089 = vpop.f32.mrf.mxu0
        %v1090 = vadd.f32 %v785, %v1089
        %v1091 = vpop.f32.mrf.mxu0
        %1092 = vmatprep.mubr.f32.mxu0 0.0
        %1093 = vmatmul.mubr.f32.gmra.mxu0 %v283
        %v1094 = vpop.f32.mrf.mxu0
        %v1095 = vadd.f32 %v790, %v1094
        %v1096 = vpop.f32.mrf.mxu0
        %1097 = vmatprep.mubr.f32.mxu0 0.0
        %1098 = vmatmul.mubr.f32.gmra.mxu0 %v286
        %v1099 = vpop.f32.mrf.mxu0
        %v1100 = vadd.f32 %v795, %v1099
        %v1101 = vpop.f32.mrf.mxu0
        %1102 = vmatprep.mubr.f32.mxu0 0.0
        %1103 = vmatmul.mubr.f32.gmra.mxu0 %v289
        %v1104 = vpop.f32.mrf.mxu0
        %v1105 = vadd.f32 %v800, %v1104
        %v1106 = vpop.f32.mrf.mxu0
        %1107 = vmatprep.mubr.f32.mxu0 0.0
        %1108 = vmatmul.mubr.f32.gmra.mxu0 %v292
        %v1109 = vpop.f32.mrf.mxu0
        %v1110 = vadd.f32 %v805, %v1109
        %v1111 = vpop.f32.mrf.mxu0
        %1112 = vmatprep.mubr.f32.mxu0 0.0
        %1113 = vmatmul.mubr.f32.gmra.mxu0 %v295
        %v1114 = vpop.f32.mrf.mxu0
        %v1115 = vadd.f32 %v810, %v1114
        %v1116 = vpop.f32.mrf.mxu0
        %1117 = vmatprep.mubr.f32.mxu0 0.0
        %1118 = vmatmul.mubr.f32.gmra.mxu0 %v298
        %v1119 = vpop.f32.mrf.mxu0
        %v1120 = vadd.f32 %v815, %v1119
        %v1121 = vpop.f32.mrf.mxu0
        %1122 = vmatprep.mubr.f32.mxu0 0.0
        %1123 = vmatmul.mubr.f32.gmra.mxu0 %v301
        %v1124 = vpop.f32.mrf.mxu0
        %v1125 = vadd.f32 %v820, %v1124
        %v1126 = vpop.f32.mrf.mxu0
        %1127 = vmatprep.mubr.f32.mxu0 0.0
        %1128 = vmatmul.mubr.f32.gmra.mxu0 %v304
        %v1129 = vpop.f32.mrf.mxu0
        %v1130 = vadd.f32 %v825, %v1129
        %v1131 = vpop.f32.mrf.mxu0
        %1132 = vmatprep.mubr.f32.mxu0 0.0
        %1133 = vmatmul.mubr.f32.gmra.mxu0 %v307
        %v1134 = vpop.f32.mrf.mxu0
        %v1135 = vadd.f32 %v830, %v1134
        %v1136 = vpop.f32.mrf.mxu0
        %1137 = vmatprep.mubr.f32.mxu0 0.0
        %1138 = vmatmul.mubr.f32.gmra.mxu0 %v310
        %v1139 = vpop.f32.mrf.mxu0
        %v1140 = vadd.f32 %v835, %v1139
        %v1141 = vpop.f32.mrf.mxu0
        %1142 = vmatprep.mubr.f32.mxu0 0.0
        %1143 = vmatmul.mubr.f32.gmra.mxu0 %v313
        %v1144 = vpop.f32.mrf.mxu0
        %v1145 = vadd.f32 %v840, %v1144
        %v1146 = vpop.f32.mrf.mxu0
        %1147 = vmatprep.mubr.f32.mxu0 0.0
        %1148 = vmatmul.mubr.f32.gmra.mxu0 %v316
        %v1149 = vpop.f32.mrf.mxu0
        %v1150 = vadd.f32 %v845, %v1149
        %v1151 = vpop.f32.mrf.mxu0
        %1152 = vmatprep.mubr.f32.mxu0 0.0
        %1153 = vmatmul.mubr.f32.gmra.mxu0 %v319
        %v1154 = vpop.f32.mrf.mxu0
        %v1155 = vadd.f32 %v850, %v1154
        %v1156 = vpop.f32.mrf.mxu0
        %1157 = vmatprep.mubr.f32.mxu0 0.0
        %1158 = vmatmul.mubr.f32.gmra.mxu0 %v322
        %v1159 = vpop.f32.mrf.mxu0
        %v1160 = vadd.f32 %v855, %v1159
        %v1161 = vpop.f32.mrf.mxu0
        %1162 = vmatprep.mubr.f32.mxu0 0.0
        %1163 = vmatmul.mubr.f32.gmra.mxu0 %v325
        %v1164 = vpop.f32.mrf.mxu0
        %v1165 = vadd.f32 %v860, %v1164
        %v1166 = vpop.f32.mrf.mxu0
        %1167 = vmatprep.mubr.f32.mxu0 0.0
        %1168 = vmatmul.mubr.f32.gmra.mxu0 %v328
        %v1169 = vpop.f32.mrf.mxu0
        %v1170 = vadd.f32 %v865, %v1169
        %v1171 = vpop.f32.mrf.mxu0
        %1172 = vmatprep.mubr.f32.mxu0 0.0
        %1173 = vmatmul.mubr.f32.gmra.mxu0 %v331
        %v1174 = vpop.f32.mrf.mxu0
        %v1175 = vadd.f32 %v870, %v1174
        %v1176 = vpop.f32.mrf.mxu0
        %1177 = vmatprep.mubr.f32.mxu0 0.0
        %1178 = vmatmul.mubr.f32.gmra.mxu0 %v334
        %v1179 = vpop.f32.mrf.mxu0
        %v1180 = vadd.f32 %v875, %v1179
        %v1181 = vpop.f32.mrf.mxu0
        %1182 = vmatprep.mubr.f32.mxu0 0.0
        %1183 = vmatmul.mubr.f32.gmra.mxu0 %v337
        %v1184 = vpop.f32.mrf.mxu0
        %v1185 = vadd.f32 %v880, %v1184
        %v1186 = vpop.f32.mrf.mxu0
        %1187 = vdwg.mxu0
        %1188 = vmatprep.subr.mxu0 0.0
        %1189 = vmatpush1.msra.mxu0 %v545
        %1190 = vmatprep.subr.mxu0 0.0
        %1191 = vmatpush1.msra.mxu0 %v544
        %1192 = vmatprep.subr.mxu0 0.0
        %1193 = vmatpush1.msra.mxu0 %v543
        %1194 = vmatprep.subr.mxu0 0.0
        %1195 = vmatpush1.msra.mxu0 %v542
        %1196 = vmatprep.subr.mxu0 0.0
        %1197 = vmatpush1.msra.mxu0 %v541
        %1198 = vmatprep.subr.mxu0 0.0
        %1199 = vmatpush1.msra.mxu0 %v540
        %1200 = vmatprep.subr.mxu0 0.0
        %1201 = vmatpush1.msra.mxu0 %v539
        %1202 = vmatprep.subr.mxu0 0.0
        %1203 = vmatpush1.msra.mxu0 %v538
        %1204 = vmatprep.subr.mxu0 0.0
        %1205 = vmatpush1.msra.mxu0 %v537
        %1206 = vmatprep.subr.mxu0 0.0
        %1207 = vmatpush1.msra.mxu0 %v536
        %1208 = vmatprep.subr.mxu0 0.0
        %1209 = vmatpush1.msra.mxu0 %v535
        %1210 = vmatprep.subr.mxu0 0.0
        %1211 = vmatpush1.msra.mxu0 %v534
        %1212 = vmatprep.subr.mxu0 0.0
        %1213 = vmatpush1.msra.mxu0 %v533
        %1214 = vmatprep.subr.mxu0 0.0
        %1215 = vmatpush1.msra.mxu0 %v532
        %1216 = vmatprep.subr.mxu0 0.0
        %1217 = vmatpush1.msra.mxu0 %v531
        %1218 = vmatprep.subr.mxu0 0.0
        %1219 = vmatpush1.msra.mxu0 %v530
        %1220 = vmatprep.subr.mxu0 0.0
        %1221 = vmatpush2.msra.mxu0 %v561
        %1222 = vmatprep.subr.mxu0 0.0
        %1223 = vmatpush2.msra.mxu0 %v560
        %1224 = vmatprep.subr.mxu0 0.0
        %1225 = vmatpush2.msra.mxu0 %v559
        %1226 = vmatprep.subr.mxu0 0.0
        %1227 = vmatpush2.msra.mxu0 %v558
        %1228 = vmatprep.subr.mxu0 0.0
        %1229 = vmatpush2.msra.mxu0 %v557
        %1230 = vmatprep.subr.mxu0 0.0
        %1231 = vmatpush2.msra.mxu0 %v556
        %1232 = vmatprep.subr.mxu0 0.0
        %1233 = vmatpush2.msra.mxu0 %v555
        %1234 = vmatprep.subr.mxu0 0.0
        %1235 = vmatpush2.msra.mxu0 %v554
        %1236 = vmatprep.subr.mxu0 0.0
        %1237 = vmatpush2.msra.mxu0 %v553
        %1238 = vmatprep.subr.mxu0 0.0
        %1239 = vmatpush2.msra.mxu0 %v552
        %1240 = vmatprep.subr.mxu0 0.0
        %1241 = vmatpush2.msra.mxu0 %v551
        %1242 = vmatprep.subr.mxu0 0.0
        %1243 = vmatpush2.msra.mxu0 %v550
        %1244 = vmatprep.subr.mxu0 0.0
        %1245 = vmatpush2.msra.mxu0 %v549
        %1246 = vmatprep.subr.mxu0 0.0
        %1247 = vmatpush2.msra.mxu0 %v548
        %1248 = vmatprep.subr.mxu0 0.0
        %1249 = vmatpush2.msra.mxu0 %v547
        %1250 = vmatprep.subr.mxu0 0.0
        %1251 = vmatpush2.msra.mxu0 %v546
        %1252 = vmatprep.mubr.f32.mxu0 %v339
        %1253 = vmatmul.mubr.f32.gmra.mxu0 %v338
        %v1254 = vpop.f32.mrf.mxu0
        %v1255 = vadd.f32 0.0, %v1254
        %v1256 = vpop.f32.mrf.mxu0
        %1257 = vmatprep.mubr.f32.mxu0 %v342
        %1258 = vmatmul.mubr.f32.gmra.mxu0 %v341
        %v1259 = vpop.f32.mrf.mxu0
        %v1260 = vadd.f32 0.0, %v1259
        %v1261 = vpop.f32.mrf.mxu0
        %1262 = vmatprep.mubr.f32.mxu0 %v345
        %1263 = vmatmul.mubr.f32.gmra.mxu0 %v344
        %v1264 = vpop.f32.mrf.mxu0
        %v1265 = vadd.f32 0.0, %v1264
        %v1266 = vpop.f32.mrf.mxu0
        %1267 = vmatprep.mubr.f32.mxu0 %v348
        %1268 = vmatmul.mubr.f32.gmra.mxu0 %v347
        %v1269 = vpop.f32.mrf.mxu0
        %v1270 = vadd.f32 0.0, %v1269
        %v1271 = vpop.f32.mrf.mxu0
        %1272 = vmatprep.mubr.f32.mxu0 %v351
        %1273 = vmatmul.mubr.f32.gmra.mxu0 %v350
        %v1274 = vpop.f32.mrf.mxu0
        %v1275 = vadd.f32 0.0, %v1274
        %v1276 = vpop.f32.mrf.mxu0
        %1277 = vmatprep.mubr.f32.mxu0 %v354
        %1278 = vmatmul.mubr.f32.gmra.mxu0 %v353
        %v1279 = vpop.f32.mrf.mxu0
        %v1280 = vadd.f32 0.0, %v1279
        %v1281 = vpop.f32.mrf.mxu0
        %1282 = vmatprep.mubr.f32.mxu0 %v357
        %1283 = vmatmul.mubr.f32.gmra.mxu0 %v356
        %v1284 = vpop.f32.mrf.mxu0
        %v1285 = vadd.f32 0.0, %v1284
        %v1286 = vpop.f32.mrf.mxu0
        %1287 = vmatprep.mubr.f32.mxu0 %v360
        %1288 = vmatmul.mubr.f32.gmra.mxu0 %v359
        %v1289 = vpop.f32.mrf.mxu0
        %v1290 = vadd.f32 0.0, %v1289
        %v1291 = vpop.f32.mrf.mxu0
        %1292 = vmatprep.mubr.f32.mxu0 %v363
        %1293 = vmatmul.mubr.f32.gmra.mxu0 %v362
        %v1294 = vpop.f32.mrf.mxu0
        %v1295 = vadd.f32 0.0, %v1294
        %v1296 = vpop.f32.mrf.mxu0
        %1297 = vmatprep.mubr.f32.mxu0 %v366
        %1298 = vmatmul.mubr.f32.gmra.mxu0 %v365
        %v1299 = vpop.f32.mrf.mxu0
        %v1300 = vadd.f32 0.0, %v1299
        %v1301 = vpop.f32.mrf.mxu0
        %1302 = vmatprep.mubr.f32.mxu0 %v369
        %1303 = vmatmul.mubr.f32.gmra.mxu0 %v368
        %v1304 = vpop.f32.mrf.mxu0
        %v1305 = vadd.f32 0.0, %v1304
        %v1306 = vpop.f32.mrf.mxu0
        %1307 = vmatprep.mubr.f32.mxu0 %v372
        %1308 = vmatmul.mubr.f32.gmra.mxu0 %v371
        %v1309 = vpop.f32.mrf.mxu0
        %v1310 = vadd.f32 0.0, %v1309
        %v1311 = vpop.f32.mrf.mxu0
        %1312 = vmatprep.mubr.f32.mxu0 %v375
        %1313 = vmatmul.mubr.f32.gmra.mxu0 %v374
        %v1314 = vpop.f32.mrf.mxu0
        %v1315 = vadd.f32 0.0, %v1314
        %v1316 = vpop.f32.mrf.mxu0
        %1317 = vmatprep.mubr.f32.mxu0 %v378
        %1318 = vmatmul.mubr.f32.gmra.mxu0 %v377
        %v1319 = vpop.f32.mrf.mxu0
        %v1320 = vadd.f32 0.0, %v1319
        %v1321 = vpop.f32.mrf.mxu0
        %1322 = vmatprep.mubr.f32.mxu0 %v381
        %1323 = vmatmul.mubr.f32.gmra.mxu0 %v380
        %v1324 = vpop.f32.mrf.mxu0
        %v1325 = vadd.f32 0.0, %v1324
        %v1326 = vpop.f32.mrf.mxu0
        %1327 = vmatprep.mubr.f32.mxu0 %v384
        %1328 = vmatmul.mubr.f32.gmra.mxu0 %v383
        %v1329 = vpop.f32.mrf.mxu0
        %v1330 = vadd.f32 0.0, %v1329
        %v1331 = vpop.f32.mrf.mxu0
        %1332 = vmatprep.mubr.f32.mxu0 %v387
        %1333 = vmatmul.mubr.f32.gmra.mxu0 %v386
        %v1334 = vpop.f32.mrf.mxu0
        %v1335 = vadd.f32 0.0, %v1334
        %v1336 = vpop.f32.mrf.mxu0
        %1337 = vmatprep.mubr.f32.mxu0 %v390
        %1338 = vmatmul.mubr.f32.gmra.mxu0 %v389
        %v1339 = vpop.f32.mrf.mxu0
        %v1340 = vadd.f32 0.0, %v1339
        %v1341 = vpop.f32.mrf.mxu0
        %1342 = vmatprep.mubr.f32.mxu0 %v393
        %1343 = vmatmul.mubr.f32.gmra.mxu0 %v392
        %v1344 = vpop.f32.mrf.mxu0
        %v1345 = vadd.f32 0.0, %v1344
        %v1346 = vpop.f32.mrf.mxu0
        %1347 = vmatprep.mubr.f32.mxu0 %v396
        %1348 = vmatmul.mubr.f32.gmra.mxu0 %v395
        %v1349 = vpop.f32.mrf.mxu0
        %v1350 = vadd.f32 0.0, %v1349
        %v1351 = vpop.f32.mrf.mxu0
        %1352 = vmatprep.mubr.f32.mxu0 %v399
        %1353 = vmatmul.mubr.f32.gmra.mxu0 %v398
        %v1354 = vpop.f32.mrf.mxu0
        %v1355 = vadd.f32 0.0, %v1354
        %v1356 = vpop.f32.mrf.mxu0
        %1357 = vmatprep.mubr.f32.mxu0 %v402
        %1358 = vmatmul.mubr.f32.gmra.mxu0 %v401
        %v1359 = vpop.f32.mrf.mxu0
        %v1360 = vadd.f32 0.0, %v1359
        %v1361 = vpop.f32.mrf.mxu0
        %1362 = vmatprep.mubr.f32.mxu0 %v405
        %1363 = vmatmul.mubr.f32.gmra.mxu0 %v404
        %v1364 = vpop.f32.mrf.mxu0
        %v1365 = vadd.f32 0.0, %v1364
        %v1366 = vpop.f32.mrf.mxu0
        %1367 = vmatprep.mubr.f32.mxu0 %v408
        %1368 = vmatmul.mubr.f32.gmra.mxu0 %v407
        %v1369 = vpop.f32.mrf.mxu0
        %v1370 = vadd.f32 0.0, %v1369
        %v1371 = vpop.f32.mrf.mxu0
        %1372 = vmatprep.mubr.f32.mxu0 %v411
        %1373 = vmatmul.mubr.f32.gmra.mxu0 %v410
        %v1374 = vpop.f32.mrf.mxu0
        %v1375 = vadd.f32 0.0, %v1374
        %v1376 = vpop.f32.mrf.mxu0
        %1377 = vmatprep.mubr.f32.mxu0 %v414
        %1378 = vmatmul.mubr.f32.gmra.mxu0 %v413
        %v1379 = vpop.f32.mrf.mxu0
        %v1380 = vadd.f32 0.0, %v1379
        %v1381 = vpop.f32.mrf.mxu0
        %1382 = vmatprep.mubr.f32.mxu0 %v417
        %1383 = vmatmul.mubr.f32.gmra.mxu0 %v416
        %v1384 = vpop.f32.mrf.mxu0
        %v1385 = vadd.f32 0.0, %v1384
        %v1386 = vpop.f32.mrf.mxu0
        %1387 = vmatprep.mubr.f32.mxu0 %v420
        %1388 = vmatmul.mubr.f32.gmra.mxu0 %v419
        %v1389 = vpop.f32.mrf.mxu0
        %v1390 = vadd.f32 0.0, %v1389
        %v1391 = vpop.f32.mrf.mxu0
        %1392 = vmatprep.mubr.f32.mxu0 %v423
        %1393 = vmatmul.mubr.f32.gmra.mxu0 %v422
        %v1394 = vpop.f32.mrf.mxu0
        %v1395 = vadd.f32 0.0, %v1394
        %v1396 = vpop.f32.mrf.mxu0
        %1397 = vmatprep.mubr.f32.mxu0 %v426
        %1398 = vmatmul.mubr.f32.gmra.mxu0 %v425
        %v1399 = vpop.f32.mrf.mxu0
        %v1400 = vadd.f32 0.0, %v1399
        %v1401 = vpop.f32.mrf.mxu0
        %1402 = vmatprep.mubr.f32.mxu0 %v429
        %1403 = vmatmul.mubr.f32.gmra.mxu0 %v428
        %v1404 = vpop.f32.mrf.mxu0
        %v1405 = vadd.f32 0.0, %v1404
        %v1406 = vpop.f32.mrf.mxu0
        %1407 = vmatprep.mubr.f32.mxu0 %v432
        %1408 = vmatmul.mubr.f32.gmra.mxu0 %v431
        %v1409 = vpop.f32.mrf.mxu0
        %v1410 = vadd.f32 0.0, %v1409
        %v1411 = vpop.f32.mrf.mxu0
        %1412 = vmatprep.mubr.f32.mxu0 %v435
        %1413 = vmatmul.mubr.f32.gmra.mxu0 %v434
        %v1414 = vpop.f32.mrf.mxu0
        %v1415 = vadd.f32 0.0, %v1414
        %v1416 = vpop.f32.mrf.mxu0
        %1417 = vmatprep.mubr.f32.mxu0 %v438
        %1418 = vmatmul.mubr.f32.gmra.mxu0 %v437
        %v1419 = vpop.f32.mrf.mxu0
        %v1420 = vadd.f32 0.0, %v1419
        %v1421 = vpop.f32.mrf.mxu0
        %1422 = vmatprep.mubr.f32.mxu0 %v441
        %1423 = vmatmul.mubr.f32.gmra.mxu0 %v440
        %v1424 = vpop.f32.mrf.mxu0
        %v1425 = vadd.f32 0.0, %v1424
        %v1426 = vpop.f32.mrf.mxu0
        %1427 = vmatprep.mubr.f32.mxu0 %v444
        %1428 = vmatmul.mubr.f32.gmra.mxu0 %v443
        %v1429 = vpop.f32.mrf.mxu0
        %v1430 = vadd.f32 0.0, %v1429
        %v1431 = vpop.f32.mrf.mxu0
        %1432 = vmatprep.mubr.f32.mxu0 %v447
        %1433 = vmatmul.mubr.f32.gmra.mxu0 %v446
        %v1434 = vpop.f32.mrf.mxu0
        %v1435 = vadd.f32 0.0, %v1434
        %v1436 = vpop.f32.mrf.mxu0
        %1437 = vmatprep.mubr.f32.mxu0 %v450
        %1438 = vmatmul.mubr.f32.gmra.mxu0 %v449
        %v1439 = vpop.f32.mrf.mxu0
        %v1440 = vadd.f32 0.0, %v1439
        %v1441 = vpop.f32.mrf.mxu0
        %1442 = vmatprep.mubr.f32.mxu0 %v453
        %1443 = vmatmul.mubr.f32.gmra.mxu0 %v452
        %v1444 = vpop.f32.mrf.mxu0
        %v1445 = vadd.f32 0.0, %v1444
        %v1446 = vpop.f32.mrf.mxu0
        %1447 = vmatprep.mubr.f32.mxu0 %v456
        %1448 = vmatmul.mubr.f32.gmra.mxu0 %v455
        %v1449 = vpop.f32.mrf.mxu0
        %v1450 = vadd.f32 0.0, %v1449
        %v1451 = vpop.f32.mrf.mxu0
        %1452 = vmatprep.mubr.f32.mxu0 %v459
        %1453 = vmatmul.mubr.f32.gmra.mxu0 %v458
        %v1454 = vpop.f32.mrf.mxu0
        %v1455 = vadd.f32 0.0, %v1454
        %v1456 = vpop.f32.mrf.mxu0
        %1457 = vmatprep.mubr.f32.mxu0 %v462
        %1458 = vmatmul.mubr.f32.gmra.mxu0 %v461
        %v1459 = vpop.f32.mrf.mxu0
        %v1460 = vadd.f32 0.0, %v1459
        %v1461 = vpop.f32.mrf.mxu0
        %1462 = vmatprep.mubr.f32.mxu0 %v465
        %1463 = vmatmul.mubr.f32.gmra.mxu0 %v464
        %v1464 = vpop.f32.mrf.mxu0
        %v1465 = vadd.f32 0.0, %v1464
        %v1466 = vpop.f32.mrf.mxu0
        %1467 = vmatprep.mubr.f32.mxu0 %v468
        %1468 = vmatmul.mubr.f32.gmra.mxu0 %v467
        %v1469 = vpop.f32.mrf.mxu0
        %v1470 = vadd.f32 0.0, %v1469
        %v1471 = vpop.f32.mrf.mxu0
        %1472 = vmatprep.mubr.f32.mxu0 %v471
        %1473 = vmatmul.mubr.f32.gmra.mxu0 %v470
        %v1474 = vpop.f32.mrf.mxu0
        %v1475 = vadd.f32 0.0, %v1474
        %v1476 = vpop.f32.mrf.mxu0
        %1477 = vmatprep.mubr.f32.mxu0 %v474
        %1478 = vmatmul.mubr.f32.gmra.mxu0 %v473
        %v1479 = vpop.f32.mrf.mxu0
        %v1480 = vadd.f32 0.0, %v1479
        %v1481 = vpop.f32.mrf.mxu0
        %1482 = vmatprep.mubr.f32.mxu0 %v477
        %1483 = vmatmul.mubr.f32.gmra.mxu0 %v476
        %v1484 = vpop.f32.mrf.mxu0
        %v1485 = vadd.f32 0.0, %v1484
        %v1486 = vpop.f32.mrf.mxu0
        %1487 = vmatprep.mubr.f32.mxu0 %v480
        %1488 = vmatmul.mubr.f32.gmra.mxu0 %v479
        %v1489 = vpop.f32.mrf.mxu0
        %v1490 = vadd.f32 0.0, %v1489
        %v1491 = vpop.f32.mrf.mxu0
        %1492 = vdwg.mxu0
        %1493 = vmatprep.subr.mxu0 0.0
        %1494 = vmatpush1.msra.mxu0 %v577
        %1495 = vmatprep.subr.mxu0 0.0
        %1496 = vmatpush1.msra.mxu0 %v576
        %1497 = vmatprep.subr.mxu0 0.0
        %1498 = vmatpush1.msra.mxu0 %v575
        %1499 = vmatprep.subr.mxu0 0.0
        %1500 = vmatpush1.msra.mxu0 %v574
        %1501 = vmatprep.subr.mxu0 0.0
        %1502 = vmatpush1.msra.mxu0 %v573
        %1503 = vmatprep.subr.mxu0 0.0
        %1504 = vmatpush1.msra.mxu0 %v572
        %1505 = vmatprep.subr.mxu0 0.0
        %1506 = vmatpush1.msra.mxu0 %v571
        %1507 = vmatprep.subr.mxu0 0.0
        %1508 = vmatpush1.msra.mxu0 %v570
        %1509 = vmatprep.subr.mxu0 0.0
        %1510 = vmatpush1.msra.mxu0 %v569
        %1511 = vmatprep.subr.mxu0 0.0
        %1512 = vmatpush1.msra.mxu0 %v568
        %1513 = vmatprep.subr.mxu0 0.0
        %1514 = vmatpush1.msra.mxu0 %v567
        %1515 = vmatprep.subr.mxu0 0.0
        %1516 = vmatpush1.msra.mxu0 %v566
        %1517 = vmatprep.subr.mxu0 0.0
        %1518 = vmatpush1.msra.mxu0 %v565
        %1519 = vmatprep.subr.mxu0 0.0
        %1520 = vmatpush1.msra.mxu0 %v564
        %1521 = vmatprep.subr.mxu0 0.0
        %1522 = vmatpush1.msra.mxu0 %v563
        %1523 = vmatprep.subr.mxu0 0.0
        %1524 = vmatpush1.msra.mxu0 %v562
        %1525 = vmatprep.subr.mxu0 0.0
        %1526 = vmatpush2.msra.mxu0 0.0
        %1527 = vmatprep.subr.mxu0 0.0
        %1528 = vmatpush2.msra.mxu0 0.0
        %1529 = vmatprep.subr.mxu0 0.0
        %1530 = vmatpush2.msra.mxu0 0.0
        %1531 = vmatprep.subr.mxu0 0.0
        %1532 = vmatpush2.msra.mxu0 0.0
        %1533 = vmatprep.subr.mxu0 0.0
        %1534 = vmatpush2.msra.mxu0 0.0
        %1535 = vmatprep.subr.mxu0 0.0
        %1536 = vmatpush2.msra.mxu0 0.0
        %1537 = vmatprep.subr.mxu0 0.0
        %1538 = vmatpush2.msra.mxu0 0.0
        %1539 = vmatprep.subr.mxu0 0.0
        %1540 = vmatpush2.msra.mxu0 0.0
        %1541 = vmatprep.subr.mxu0 0.0
        %1542 = vmatpush2.msra.mxu0 0.0
        %1543 = vmatprep.subr.mxu0 0.0
        %1544 = vmatpush2.msra.mxu0 0.0
        %1545 = vmatprep.subr.mxu0 0.0
        %1546 = vmatpush2.msra.mxu0 0.0
        %1547 = vmatprep.subr.mxu0 0.0
        %1548 = vmatpush2.msra.mxu0 0.0
        %1549 = vmatprep.subr.mxu0 0.0
        %1550 = vmatpush2.msra.mxu0 0.0
        %1551 = vmatprep.subr.mxu0 0.0
        %1552 = vmatpush2.msra.mxu0 0.0
        %1553 = vmatprep.subr.mxu0 0.0
        %1554 = vmatpush2.msra.mxu0 0.0
        %1555 = vmatprep.subr.mxu0 0.0
        %1556 = vmatpush2.msra.mxu0 0.0
        %1557 = vmatprep.mubr.f32.mxu0 0.0
        %1558 = vmatmul.mubr.f32.gmra.mxu0 %v340
        %v1559 = vpop.f32.mrf.mxu0
        %v1560 = vadd.f32 %v1255, %v1559
        %v1561 = vpop.f32.mrf.mxu0
        %1562 = vmatprep.mubr.f32.mxu0 0.0
        %1563 = vmatmul.mubr.f32.gmra.mxu0 %v343
        %v1564 = vpop.f32.mrf.mxu0
        %v1565 = vadd.f32 %v1260, %v1564
        %v1566 = vpop.f32.mrf.mxu0
        %1567 = vmatprep.mubr.f32.mxu0 0.0
        %1568 = vmatmul.mubr.f32.gmra.mxu0 %v346
        %v1569 = vpop.f32.mrf.mxu0
        %v1570 = vadd.f32 %v1265, %v1569
        %v1571 = vpop.f32.mrf.mxu0
        %1572 = vmatprep.mubr.f32.mxu0 0.0
        %1573 = vmatmul.mubr.f32.gmra.mxu0 %v349
        %v1574 = vpop.f32.mrf.mxu0
        %v1575 = vadd.f32 %v1270, %v1574
        %v1576 = vpop.f32.mrf.mxu0
        %1577 = vmatprep.mubr.f32.mxu0 0.0
        %1578 = vmatmul.mubr.f32.gmra.mxu0 %v352
        %v1579 = vpop.f32.mrf.mxu0
        %v1580 = vadd.f32 %v1275, %v1579
        %v1581 = vpop.f32.mrf.mxu0
        %1582 = vmatprep.mubr.f32.mxu0 0.0
        %1583 = vmatmul.mubr.f32.gmra.mxu0 %v355
        %v1584 = vpop.f32.mrf.mxu0
        %v1585 = vadd.f32 %v1280, %v1584
        %v1586 = vpop.f32.mrf.mxu0
        %1587 = vmatprep.mubr.f32.mxu0 0.0
        %1588 = vmatmul.mubr.f32.gmra.mxu0 %v358
        %v1589 = vpop.f32.mrf.mxu0
        %v1590 = vadd.f32 %v1285, %v1589
        %v1591 = vpop.f32.mrf.mxu0
        %1592 = vmatprep.mubr.f32.mxu0 0.0
        %1593 = vmatmul.mubr.f32.gmra.mxu0 %v361
        %v1594 = vpop.f32.mrf.mxu0
        %v1595 = vadd.f32 %v1290, %v1594
        %v1596 = vpop.f32.mrf.mxu0
        %1597 = vmatprep.mubr.f32.mxu0 0.0
        %1598 = vmatmul.mubr.f32.gmra.mxu0 %v364
        %v1599 = vpop.f32.mrf.mxu0
        %v1600 = vadd.f32 %v1295, %v1599
        %v1601 = vpop.f32.mrf.mxu0
        %1602 = vmatprep.mubr.f32.mxu0 0.0
        %1603 = vmatmul.mubr.f32.gmra.mxu0 %v367
        %v1604 = vpop.f32.mrf.mxu0
        %v1605 = vadd.f32 %v1300, %v1604
        %v1606 = vpop.f32.mrf.mxu0
        %1607 = vmatprep.mubr.f32.mxu0 0.0
        %1608 = vmatmul.mubr.f32.gmra.mxu0 %v370
        %v1609 = vpop.f32.mrf.mxu0
        %v1610 = vadd.f32 %v1305, %v1609
        %v1611 = vpop.f32.mrf.mxu0
        %1612 = vmatprep.mubr.f32.mxu0 0.0
        %1613 = vmatmul.mubr.f32.gmra.mxu0 %v373
        %v1614 = vpop.f32.mrf.mxu0
        %v1615 = vadd.f32 %v1310, %v1614
        %v1616 = vpop.f32.mrf.mxu0
        %1617 = vmatprep.mubr.f32.mxu0 0.0
        %1618 = vmatmul.mubr.f32.gmra.mxu0 %v376
        %v1619 = vpop.f32.mrf.mxu0
        %v1620 = vadd.f32 %v1315, %v1619
        %v1621 = vpop.f32.mrf.mxu0
        %1622 = vmatprep.mubr.f32.mxu0 0.0
        %1623 = vmatmul.mubr.f32.gmra.mxu0 %v379
        %v1624 = vpop.f32.mrf.mxu0
        %v1625 = vadd.f32 %v1320, %v1624
        %v1626 = vpop.f32.mrf.mxu0
        %1627 = vmatprep.mubr.f32.mxu0 0.0
        %1628 = vmatmul.mubr.f32.gmra.mxu0 %v382
        %v1629 = vpop.f32.mrf.mxu0
        %v1630 = vadd.f32 %v1325, %v1629
        %v1631 = vpop.f32.mrf.mxu0
        %1632 = vmatprep.mubr.f32.mxu0 0.0
        %1633 = vmatmul.mubr.f32.gmra.mxu0 %v385
        %v1634 = vpop.f32.mrf.mxu0
        %v1635 = vadd.f32 %v1330, %v1634
        %v1636 = vpop.f32.mrf.mxu0
        %1637 = vmatprep.mubr.f32.mxu0 0.0
        %1638 = vmatmul.mubr.f32.gmra.mxu0 %v388
        %v1639 = vpop.f32.mrf.mxu0
        %v1640 = vadd.f32 %v1335, %v1639
        %v1641 = vpop.f32.mrf.mxu0
        %1642 = vmatprep.mubr.f32.mxu0 0.0
        %1643 = vmatmul.mubr.f32.gmra.mxu0 %v391
        %v1644 = vpop.f32.mrf.mxu0
        %v1645 = vadd.f32 %v1340, %v1644
        %v1646 = vpop.f32.mrf.mxu0
        %1647 = vmatprep.mubr.f32.mxu0 0.0
        %1648 = vmatmul.mubr.f32.gmra.mxu0 %v394
        %v1649 = vpop.f32.mrf.mxu0
        %v1650 = vadd.f32 %v1345, %v1649
        %v1651 = vpop.f32.mrf.mxu0
        %1652 = vmatprep.mubr.f32.mxu0 0.0
        %1653 = vmatmul.mubr.f32.gmra.mxu0 %v397
        %v1654 = vpop.f32.mrf.mxu0
        %v1655 = vadd.f32 %v1350, %v1654
        %v1656 = vpop.f32.mrf.mxu0
        %1657 = vmatprep.mubr.f32.mxu0 0.0
        %1658 = vmatmul.mubr.f32.gmra.mxu0 %v400
        %v1659 = vpop.f32.mrf.mxu0
        %v1660 = vadd.f32 %v1355, %v1659
        %v1661 = vpop.f32.mrf.mxu0
        %1662 = vmatprep.mubr.f32.mxu0 0.0
        %1663 = vmatmul.mubr.f32.gmra.mxu0 %v403
        %v1664 = vpop.f32.mrf.mxu0
        %v1665 = vadd.f32 %v1360, %v1664
        %v1666 = vpop.f32.mrf.mxu0
        %1667 = vmatprep.mubr.f32.mxu0 0.0
        %1668 = vmatmul.mubr.f32.gmra.mxu0 %v406
        %v1669 = vpop.f32.mrf.mxu0
        %v1670 = vadd.f32 %v1365, %v1669
        %v1671 = vpop.f32.mrf.mxu0
        %1672 = vmatprep.mubr.f32.mxu0 0.0
        %1673 = vmatmul.mubr.f32.gmra.mxu0 %v409
        %v1674 = vpop.f32.mrf.mxu0
        %v1675 = vadd.f32 %v1370, %v1674
        %v1676 = vpop.f32.mrf.mxu0
        %1677 = vmatprep.mubr.f32.mxu0 0.0
        %1678 = vmatmul.mubr.f32.gmra.mxu0 %v412
        %v1679 = vpop.f32.mrf.mxu0
        %v1680 = vadd.f32 %v1375, %v1679
        %v1681 = vpop.f32.mrf.mxu0
        %1682 = vmatprep.mubr.f32.mxu0 0.0
        %1683 = vmatmul.mubr.f32.gmra.mxu0 %v415
        %v1684 = vpop.f32.mrf.mxu0
        %v1685 = vadd.f32 %v1380, %v1684
        %v1686 = vpop.f32.mrf.mxu0
        %1687 = vmatprep.mubr.f32.mxu0 0.0
        %1688 = vmatmul.mubr.f32.gmra.mxu0 %v418
        %v1689 = vpop.f32.mrf.mxu0
        %v1690 = vadd.f32 %v1385, %v1689
        %v1691 = vpop.f32.mrf.mxu0
        %1692 = vmatprep.mubr.f32.mxu0 0.0
        %1693 = vmatmul.mubr.f32.gmra.mxu0 %v421
        %v1694 = vpop.f32.mrf.mxu0
        %v1695 = vadd.f32 %v1390, %v1694
        %v1696 = vpop.f32.mrf.mxu0
        %1697 = vmatprep.mubr.f32.mxu0 0.0
        %1698 = vmatmul.mubr.f32.gmra.mxu0 %v424
        %v1699 = vpop.f32.mrf.mxu0
        %v1700 = vadd.f32 %v1395, %v1699
        %v1701 = vpop.f32.mrf.mxu0
        %1702 = vmatprep.mubr.f32.mxu0 0.0
        %1703 = vmatmul.mubr.f32.gmra.mxu0 %v427
        %v1704 = vpop.f32.mrf.mxu0
        %v1705 = vadd.f32 %v1400, %v1704
        %v1706 = vpop.f32.mrf.mxu0
        %1707 = vmatprep.mubr.f32.mxu0 0.0
        %1708 = vmatmul.mubr.f32.gmra.mxu0 %v430
        %v1709 = vpop.f32.mrf.mxu0
        %v1710 = vadd.f32 %v1405, %v1709
        %v1711 = vpop.f32.mrf.mxu0
        %1712 = vmatprep.mubr.f32.mxu0 0.0
        %1713 = vmatmul.mubr.f32.gmra.mxu0 %v433
        %v1714 = vpop.f32.mrf.mxu0
        %v1715 = vadd.f32 %v1410, %v1714
        %v1716 = vpop.f32.mrf.mxu0
        %1717 = vmatprep.mubr.f32.mxu0 0.0
        %1718 = vmatmul.mubr.f32.gmra.mxu0 %v436
        %v1719 = vpop.f32.mrf.mxu0
        %v1720 = vadd.f32 %v1415, %v1719
        %v1721 = vpop.f32.mrf.mxu0
        %1722 = vmatprep.mubr.f32.mxu0 0.0
        %1723 = vmatmul.mubr.f32.gmra.mxu0 %v439
        %v1724 = vpop.f32.mrf.mxu0
        %v1725 = vadd.f32 %v1420, %v1724
        %v1726 = vpop.f32.mrf.mxu0
        %1727 = vmatprep.mubr.f32.mxu0 0.0
        %1728 = vmatmul.mubr.f32.gmra.mxu0 %v442
        %v1729 = vpop.f32.mrf.mxu0
        %v1730 = vadd.f32 %v1425, %v1729
        %v1731 = vpop.f32.mrf.mxu0
        %1732 = vmatprep.mubr.f32.mxu0 0.0
        %1733 = vmatmul.mubr.f32.gmra.mxu0 %v445
        %v1734 = vpop.f32.mrf.mxu0
        %v1735 = vadd.f32 %v1430, %v1734
        %v1736 = vpop.f32.mrf.mxu0
        %1737 = vmatprep.mubr.f32.mxu0 0.0
        %1738 = vmatmul.mubr.f32.gmra.mxu0 %v448
        %v1739 = vpop.f32.mrf.mxu0
        %v1740 = vadd.f32 %v1435, %v1739
        %v1741 = vpop.f32.mrf.mxu0
        %1742 = vmatprep.mubr.f32.mxu0 0.0
        %1743 = vmatmul.mubr.f32.gmra.mxu0 %v451
        %v1744 = vpop.f32.mrf.mxu0
        %v1745 = vadd.f32 %v1440, %v1744
        %v1746 = vpop.f32.mrf.mxu0
        %1747 = vmatprep.mubr.f32.mxu0 0.0
        %1748 = vmatmul.mubr.f32.gmra.mxu0 %v454
        %v1749 = vpop.f32.mrf.mxu0
        %v1750 = vadd.f32 %v1445, %v1749
        %v1751 = vpop.f32.mrf.mxu0
        %1752 = vmatprep.mubr.f32.mxu0 0.0
        %1753 = vmatmul.mubr.f32.gmra.mxu0 %v457
        %v1754 = vpop.f32.mrf.mxu0
        %v1755 = vadd.f32 %v1450, %v1754
        %v1756 = vpop.f32.mrf.mxu0
        %1757 = vmatprep.mubr.f32.mxu0 0.0
        %1758 = vmatmul.mubr.f32.gmra.mxu0 %v460
        %v1759 = vpop.f32.mrf.mxu0
        %v1760 = vadd.f32 %v1455, %v1759
        %v1761 = vpop.f32.mrf.mxu0
        %1762 = vmatprep.mubr.f32.mxu0 0.0
        %1763 = vmatmul.mubr.f32.gmra.mxu0 %v463
        %v1764 = vpop.f32.mrf.mxu0
        %v1765 = vadd.f32 %v1460, %v1764
        %v1766 = vpop.f32.mrf.mxu0
        %1767 = vmatprep.mubr.f32.mxu0 0.0
        %1768 = vmatmul.mubr.f32.gmra.mxu0 %v466
        %v1769 = vpop.f32.mrf.mxu0
        %v1770 = vadd.f32 %v1465, %v1769
        %v1771 = vpop.f32.mrf.mxu0
        %1772 = vmatprep.mubr.f32.mxu0 0.0
        %1773 = vmatmul.mubr.f32.gmra.mxu0 %v469
        %v1774 = vpop.f32.mrf.mxu0
        %v1775 = vadd.f32 %v1470, %v1774
        %v1776 = vpop.f32.mrf.mxu0
        %1777 = vmatprep.mubr.f32.mxu0 0.0
        %1778 = vmatmul.mubr.f32.gmra.mxu0 %v472
        %v1779 = vpop.f32.mrf.mxu0
        %v1780 = vadd.f32 %v1475, %v1779
        %v1781 = vpop.f32.mrf.mxu0
        %1782 = vmatprep.mubr.f32.mxu0 0.0
        %1783 = vmatmul.mubr.f32.gmra.mxu0 %v475
        %v1784 = vpop.f32.mrf.mxu0
        %v1785 = vadd.f32 %v1480, %v1784
        %v1786 = vpop.f32.mrf.mxu0
        %1787 = vmatprep.mubr.f32.mxu0 0.0
        %1788 = vmatmul.mubr.f32.gmra.mxu0 %v478
        %v1789 = vpop.f32.mrf.mxu0
        %v1790 = vadd.f32 %v1485, %v1789
        %v1791 = vpop.f32.mrf.mxu0
        %1792 = vmatprep.mubr.f32.mxu0 0.0
        %1793 = vmatmul.mubr.f32.gmra.mxu0 %v481
        %v1794 = vpop.f32.mrf.mxu0
        %v1795 = vadd.f32 %v1490, %v1794
        %v1796 = vpop.f32.mrf.mxu0
        %1797 = vdwg.mxu0
        %vm1798 = vcmask 523264
        %1799 = vst.msk [vmem:[%s192] sm:$0xff] %vm1798, %v950
        %1800 = vst.msk [vmem:[%s192 + $0x8] sm:$0xff] %vm1798, %v955
        %1801 = vst.msk [vmem:[%s192 + $0x10] sm:$0xff] %vm1798, %v960
        %1802 = vst.msk [vmem:[%s192 + $0x18] sm:$0xff] %vm1798, %v965
        %1803 = vst.msk [vmem:[%s192 + $0x20] sm:$0xff] %vm1798, %v970
        %1804 = vst.msk [vmem:[%s192 + $0x28] sm:$0xff] %vm1798, %v975
        %1805 = vst.msk [vmem:[%s192 + $0x30] sm:$0xff] %vm1798, %v980
        %1806 = vst.msk [vmem:[%s192 + $0x38] sm:$0xff] %vm1798, %v985
        %1807 = vst.msk [vmem:[%s192 + $0x40] sm:$0xff] %vm1798, %v990
        %1808 = vst.msk [vmem:[%s192 + $0x48] sm:$0xff] %vm1798, %v995
        %1809 = vst.msk [vmem:[%s192 + $0x50] sm:$0xff] %vm1798, %v1000
        %1810 = vst.msk [vmem:[%s192 + $0x58] sm:$0xff] %vm1798, %v1005
        %1811 = vst.msk [vmem:[%s192 + $0x60] sm:$0xff] %vm1798, %v1010
        %1812 = vst.msk [vmem:[%s192 + $0x68] sm:$0xff] %vm1798, %v1015
        %1813 = vst.msk [vmem:[%s192 + $0x70] sm:$0xff] %vm1798, %v1020
        %1814 = vst.msk [vmem:[%s192 + $0x78] sm:$0xff] %vm1798, %v1025
        %1815 = vst.msk [vmem:[%s192 + $0x80] sm:$0xff] %vm1798, %v1030
        %1816 = vst.msk [vmem:[%s192 + $0x88] sm:$0xff] %vm1798, %v1035
        %1817 = vst.msk [vmem:[%s192 + $0x90] sm:$0xff] %vm1798, %v1040
        %1818 = vst.msk [vmem:[%s192 + $0x98] sm:$0xff] %vm1798, %v1045
        %1819 = vst.msk [vmem:[%s192 + $0xa0] sm:$0xff] %vm1798, %v1050
        %1820 = vst.msk [vmem:[%s192 + $0xa8] sm:$0xff] %vm1798, %v1055
        %1821 = vst.msk [vmem:[%s192 + $0xb0] sm:$0xff] %vm1798, %v1060
        %1822 = vst.msk [vmem:[%s192 + $0xb8] sm:$0xff] %vm1798, %v1065
        %1823 = vst.msk [vmem:[%s192 + $0xc0] sm:$0xff] %vm1798, %v1070
        %1824 = vst.msk [vmem:[%s192 + $0xc8] sm:$0xff] %vm1798, %v1075
        %1825 = vst.msk [vmem:[%s192 + $0xd0] sm:$0xff] %vm1798, %v1080
        %1826 = vst.msk [vmem:[%s192 + $0xd8] sm:$0xff] %vm1798, %v1085
        %1827 = vst.msk [vmem:[%s192 + $0xe0] sm:$0xff] %vm1798, %v1090
        %1828 = vst.msk [vmem:[%s192 + $0xe8] sm:$0xff] %vm1798, %v1095
        %1829 = vst.msk [vmem:[%s192 + $0xf0] sm:$0xff] %vm1798, %v1100
        %1830 = vst.msk [vmem:[%s192 + $0xf8] sm:$0xff] %vm1798, %v1105
        %1831 = vst.msk [vmem:[%s192 + $0x100] sm:$0xff] %vm1798, %v1110
        %1832 = vst.msk [vmem:[%s192 + $0x108] sm:$0xff] %vm1798, %v1115
        %1833 = vst.msk [vmem:[%s192 + $0x110] sm:$0xff] %vm1798, %v1120
        %1834 = vst.msk [vmem:[%s192 + $0x118] sm:$0xff] %vm1798, %v1125
        %1835 = vst.msk [vmem:[%s192 + $0x120] sm:$0xff] %vm1798, %v1130
        %1836 = vst.msk [vmem:[%s192 + $0x128] sm:$0xff] %vm1798, %v1135
        %1837 = vst.msk [vmem:[%s192 + $0x130] sm:$0xff] %vm1798, %v1140
        %1838 = vst.msk [vmem:[%s192 + $0x138] sm:$0xff] %vm1798, %v1145
        %1839 = vst.msk [vmem:[%s192 + $0x140] sm:$0xff] %vm1798, %v1150
        %1840 = vst.msk [vmem:[%s192 + $0x148] sm:$0xff] %vm1798, %v1155
        %1841 = vst.msk [vmem:[%s192 + $0x150] sm:$0xff] %vm1798, %v1160
        %1842 = vst.msk [vmem:[%s192 + $0x158] sm:$0xff] %vm1798, %v1165
        %1843 = vst.msk [vmem:[%s192 + $0x160] sm:$0xff] %vm1798, %v1170
        %1844 = vst.msk [vmem:[%s192 + $0x168] sm:$0xff] %vm1798, %v1175
        %1845 = vst.msk [vmem:[%s192 + $0x170] sm:$0xff] %vm1798, %v1180
        %1846 = vst.msk [vmem:[%s192 + $0x178] sm:$0xff] %vm1798, %v1185
        %1847 = vst.msk [vmem:[%s192 + $0x180] sm:$0xff] %vm1798, %v1560
        %1848 = vst.msk [vmem:[%s192 + $0x188] sm:$0xff] %vm1798, %v1565
        %1849 = vst.msk [vmem:[%s192 + $0x190] sm:$0xff] %vm1798, %v1570
        %1850 = vst.msk [vmem:[%s192 + $0x198] sm:$0xff] %vm1798, %v1575
        %1851 = vst.msk [vmem:[%s192 + $0x1a0] sm:$0xff] %vm1798, %v1580
        %1852 = vst.msk [vmem:[%s192 + $0x1a8] sm:$0xff] %vm1798, %v1585
        %1853 = vst.msk [vmem:[%s192 + $0x1b0] sm:$0xff] %vm1798, %v1590
        %1854 = vst.msk [vmem:[%s192 + $0x1b8] sm:$0xff] %vm1798, %v1595
        %1855 = vst.msk [vmem:[%s192 + $0x1c0] sm:$0xff] %vm1798, %v1600
        %1856 = vst.msk [vmem:[%s192 + $0x1c8] sm:$0xff] %vm1798, %v1605
        %1857 = vst.msk [vmem:[%s192 + $0x1d0] sm:$0xff] %vm1798, %v1610
        %1858 = vst.msk [vmem:[%s192 + $0x1d8] sm:$0xff] %vm1798, %v1615
        %1859 = vst.msk [vmem:[%s192 + $0x1e0] sm:$0xff] %vm1798, %v1620
        %1860 = vst.msk [vmem:[%s192 + $0x1e8] sm:$0xff] %vm1798, %v1625
        %1861 = vst.msk [vmem:[%s192 + $0x1f0] sm:$0xff] %vm1798, %v1630
        %1862 = vst.msk [vmem:[%s192 + $0x1f8] sm:$0xff] %vm1798, %v1635
        %1863 = vst.msk [vmem:[%s192 + $0x200] sm:$0xff] %vm1798, %v1640
        %1864 = vst.msk [vmem:[%s192 + $0x208] sm:$0xff] %vm1798, %v1645
        %1865 = vst.msk [vmem:[%s192 + $0x210] sm:$0xff] %vm1798, %v1650
        %1866 = vst.msk [vmem:[%s192 + $0x218] sm:$0xff] %vm1798, %v1655
        %1867 = vst.msk [vmem:[%s192 + $0x220] sm:$0xff] %vm1798, %v1660
        %1868 = vst.msk [vmem:[%s192 + $0x228] sm:$0xff] %vm1798, %v1665
        %1869 = vst.msk [vmem:[%s192 + $0x230] sm:$0xff] %vm1798, %v1670
        %1870 = vst.msk [vmem:[%s192 + $0x238] sm:$0xff] %vm1798, %v1675
        %1871 = vst.msk [vmem:[%s192 + $0x240] sm:$0xff] %vm1798, %v1680
        %1872 = vst.msk [vmem:[%s192 + $0x248] sm:$0xff] %vm1798, %v1685
        %1873 = vst.msk [vmem:[%s192 + $0x250] sm:$0xff] %vm1798, %v1690
        %1874 = vst.msk [vmem:[%s192 + $0x258] sm:$0xff] %vm1798, %v1695
        %1875 = vst.msk [vmem:[%s192 + $0x260] sm:$0xff] %vm1798, %v1700
        %1876 = vst.msk [vmem:[%s192 + $0x268] sm:$0xff] %vm1798, %v1705
        %1877 = vst.msk [vmem:[%s192 + $0x270] sm:$0xff] %vm1798, %v1710
        %1878 = vst.msk [vmem:[%s192 + $0x278] sm:$0xff] %vm1798, %v1715
        %1879 = vst.msk [vmem:[%s192 + $0x280] sm:$0xff] %vm1798, %v1720
        %1880 = vst.msk [vmem:[%s192 + $0x288] sm:$0xff] %vm1798, %v1725
        %1881 = vst.msk [vmem:[%s192 + $0x290] sm:$0xff] %vm1798, %v1730
        %1882 = vst.msk [vmem:[%s192 + $0x298] sm:$0xff] %vm1798, %v1735
        %1883 = vst.msk [vmem:[%s192 + $0x2a0] sm:$0xff] %vm1798, %v1740
        %1884 = vst.msk [vmem:[%s192 + $0x2a8] sm:$0xff] %vm1798, %v1745
        %1885 = vst.msk [vmem:[%s192 + $0x2b0] sm:$0xff] %vm1798, %v1750
        %1886 = vst.msk [vmem:[%s192 + $0x2b8] sm:$0xff] %vm1798, %v1755
        %1887 = vst.msk [vmem:[%s192 + $0x2c0] sm:$0xff] %vm1798, %v1760
        %1888 = vst.msk [vmem:[%s192 + $0x2c8] sm:$0xff] %vm1798, %v1765
        %1889 = vst.msk [vmem:[%s192 + $0x2d0] sm:$0xff] %vm1798, %v1770
        %1890 = vst.msk [vmem:[%s192 + $0x2d8] sm:$0xff] %vm1798, %v1775
        %1891 = vst.msk [vmem:[%s192 + $0x2e0] sm:$0xff] %vm1798, %v1780
        %1892 = vst.msk [vmem:[%s192 + $0x2e8] sm:$0xff] %vm1798, %v1785
        %1893 = vst.msk [vmem:[%s192 + $0x2f0] sm:$0xff] %vm1798, %v1790
        %1894 = vst.msk [vmem:[%s192 + $0x2f8] sm:$0xff] %vm1798, %v1795
        %s1895 = smul.u32 2, %s16
        %p1896 = scmp.lt.s32.totalorder %s1895, 3
        %s1897 = scalar_select %p1896, %s1895, 3
        %s1898 = smul.addr %s1897, 48
        %s1899 = smul.addr %s1898, 8
        %s1900 = scalar_lea.vmem %s2, %s1899
        // Predicated region
        $region33: #{tpu_custom_call.1} parent=27 // pred_check
          %p1901 = pneg %p86
        $region34: #{tpu_custom_call.1} parent=27 // pred_check_branch
          %1903 = sbr.rel (%p1901) target = $region36
        $region35: #{tpu_custom_call.1} parent=27 // pred_region
          %s1904 = smul.u32 2, %s16
        $region36: #{tpu_custom_call.1} parent=27 // pred_fallthru
          _
      $region28: #{tpu_custom_call.1} parent=5 // pred_fallthru
        _
      %p1905 = scmp.le.s32.totalorder 2, %s11
      // Predicated region
      $region37: #{tpu_custom_call.1} parent=5 // pred_check
        %p1906 = pneg %p1905
      $region38: #{tpu_custom_call.1} parent=5 // pred_check_branch
        %1908 = sbr.rel (%p1906) target = $region40
      $region39: #{tpu_custom_call.1} parent=5 // pred_region
        %s1909 = ssub.s32 %s11, 2
        // Predicated region
        $region41: #{tpu_custom_call.1} parent=39 // pred_check
          %p1910 = pneg %p92
        $region42: #{tpu_custom_call.1} parent=39 // pred_check_branch
          %1912 = sbr.rel (%p1910) target = $region44
        $region43: #{tpu_custom_call.1} parent=39 // pred_region
          %s1913 = smul.u32 2, %s17
          %p1914 = scmp.lt.s32.totalorder %s1913, 3
          %s1915 = scalar_select %p1914, %s1913, 3
          %s1916 = smul.addr %s1915, 48
          %s1917 = smul.addr %s1916, 8
          %s1918 = scalar_lea.vmem %s2, %s1917
        $region44: #{tpu_custom_call.1} parent=39 // pred_fallthru
          _
      $region40: #{tpu_custom_call.1} parent=5 // pred_fallthru
        _
    $region6: #{tpu_custom_call.1} parent=1 // loop_footer
      %s15 = sadd.s32 1, %s11
    $region7: #{tpu_custom_call.1} parent=1 // loop_footer_branch
      %10 = sbr.rel target = $region3
    $region8: #{tpu_custom_call.1} parent=1 // loop_exit
      _
    %1919 = vsyncpa [#allocation3], 1
    %s1920 = scalar_lea.sflag [#allocation3], 1
    %1921 = vsyncpa %s1920, 1

</llo_original>
